<compile_context>
chip_gen: v7x
topology: tpu7x:2x2x1
jax: 0.10.0
libtpu: 0.0.40
codegen_flags: <defaults>
</compile_context>

<pallas_src>
import jax
import jax.numpy as jnp
from jax.experimental import pallas as pl
from jax.experimental.pallas import tpu as pltpu


# ---------------------------------------------------------------------------
# EncoderCNN: fused conv-stem + ReLU + global-avg-pool + fc + ReLU + Dropout
# ---------------------------------------------------------------------------
def encoder_forward(images, w_stem, b_stem, w_fc, b_fc, drop_u, *, row_tile=8):
    """images: [B, Cin, H, W] f32 (NCHW). Returns features [B, E] f32."""
    B, Cin, H, W = images.shape
    Cstem = w_stem.shape[0]
    E = w_fc.shape[0]
    TH = min(row_tile, H)
    assert H % TH == 0, "demo assumes H divisible by the row tile"
    assert W % 8 == 0, "in-kernel row flattening assumes W % 8 == 0"
    n_row_tiles = H // TH
    inv_hw = 1.0 / float(H * W)

    # Layout glue only (1x the image, NOT the 9x im2col expansion):
    # NCHW -> padded NHWC, bf16 matmul operands.
    xpad = jnp.pad(images.transpose(0, 2, 3, 1),
                   ((0, 0), (1, 1), (1, 1), (0, 0))).astype(jnp.bfloat16)
    # Tap-major conv weight: w_taps[dy*3+dx, cin, cout] = w_stem[cout, cin, dy, dx]
    w_taps = jnp.transpose(w_stem, (2, 3, 1, 0)).reshape(9, Cin, Cstem)
    w_taps = w_taps.astype(jnp.bfloat16)
    w_fc_t = w_fc.T.astype(jnp.bfloat16)                       # [Cstem, E]
    b_stem2 = b_stem.reshape(1, Cstem).astype(jnp.float32)
    b_fc2 = b_fc.reshape(1, E).astype(jnp.float32)
    du3 = drop_u.reshape(B, 1, E).astype(jnp.float32)          # per-batch uniforms

    def kernel(img_ref, wtap_ref, bstem_ref, wfc_ref, bfc_ref, du_ref,
               out_ref, pooled_ref):
        t = pl.program_id(1)

        @pl.when(t == 0)
        def _init():
            pooled_ref[...] = jnp.zeros_like(pooled_ref)

        # 3x3 'same' conv on TH output rows x W cols as 9 shifted-window
        # matmuls accumulated in f32.
        r0 = pl.multiple_of(t * TH, TH)
        acc = jnp.zeros((TH * W, Cstem), jnp.float32)
        for dy in range(3):
            for dx in range(3):
                win = img_ref[0, pl.ds(r0 + dy, TH), pl.ds(dx, W), :]  # [TH,W,Cin]
                lhs = win.reshape(TH * W, Cin)
                acc = acc + jnp.dot(lhs, wtap_ref[dy * 3 + dx],
                                    preferred_element_type=jnp.float32)
        feat = jnp.maximum(acc + bstem_ref[...], 0.0)          # [TH*W, Cstem] f32

        # Global-average-pool: accumulate the per-tile spatial sum.
        pooled_ref[...] += jnp.sum(feat, axis=0, keepdims=True)

        @pl.when(t == pl.num_programs(1) - 1)
        def _finalize():
            pooled = pooled_ref[...] * inv_hw                  # [1, Cstem] f32
            logits = jnp.dot(pooled.astype(jnp.bfloat16), wfc_ref[...],
                             preferred_element_type=jnp.float32) + bfc_ref[...]
            relu = jnp.maximum(logits, 0.0)
            # Dropout(p=0.5), inverted scaling.
            keep = du_ref[0] < 0.5
            out_ref[0] = jnp.where(keep, relu * 2.0, 0.0)

    out3 = pl.pallas_call(
        kernel,
        grid=(B, n_row_tiles),
        in_specs=[
            # padded image: one block per batch, resident across the spatial axis
            pl.BlockSpec((1, H + 2, W + 2, Cin), lambda b, t: (b, 0, 0, 0)),
            pl.BlockSpec((9, Cin, Cstem), lambda b, t: (0, 0, 0)),
            pl.BlockSpec((1, Cstem), lambda b, t: (0, 0)),
            pl.BlockSpec((Cstem, E), lambda b, t: (0, 0)),
            pl.BlockSpec((1, E), lambda b, t: (0, 0)),
            pl.BlockSpec((1, 1, E), lambda b, t: (b, 0, 0)),   # dropout uniforms
        ],
        out_specs=pl.BlockSpec((1, 1, E), lambda b, t: (b, 0, 0)),
        out_shape=jax.ShapeDtypeStruct((B, 1, E), jnp.float32),
        scratch_shapes=[pltpu.VMEM((1, Cstem), jnp.float32)],  # pooled-sum acc
        compiler_params=pltpu.CompilerParams(
            dimension_semantics=("parallel", "arbitrary"),
            vmem_limit_bytes=32 * 1024 * 1024),
    )(xpad, w_taps, b_stem2, w_fc_t, b_fc2, du3)
    return out3.reshape(B, E)


# ---------------------------------------------------------------------------
# DecoderRNN helpers: batched projections (hoisted out of the time recurrence)
# ---------------------------------------------------------------------------
def _input_proj(x2d, sc2d, w_t_bf16, bias):
    """(x * dropout_scale) @ W^T + bias, one MXU call for all timesteps."""
    S, E = x2d.shape
    _, H4 = w_t_bf16.shape

    def kernel(x_ref, sc_ref, w_ref, b_ref, out_ref):
        x = (x_ref[...] * sc_ref[...]).astype(jnp.bfloat16)
        out_ref[...] = (jnp.dot(x, w_ref[...],
                                preferred_element_type=jnp.float32) + b_ref[...])

    return pl.pallas_call(
        kernel,
        grid=(1,),
        in_specs=[pl.BlockSpec((S, E), lambda i: (0, 0)),
                  pl.BlockSpec((S, E), lambda i: (0, 0)),
                  pl.BlockSpec((E, H4), lambda i: (0, 0)),
                  pl.BlockSpec((1, H4), lambda i: (0, 0))],
        out_specs=pl.BlockSpec((S, H4), lambda i: (0, 0)),
        out_shape=jax.ShapeDtypeStruct((S, H4), jnp.float32),
    )(x2d, sc2d, w_t_bf16, bias)


def _linear(x2d, w_t_bf16, bias):
    """x @ W^T + bias (hidden -> vocab), one MXU call for all timesteps."""
    S, K = x2d.shape
    _, N = w_t_bf16.shape

    def kernel(x_ref, w_ref, b_ref, out_ref):
        out_ref[...] = (jnp.dot(x_ref[...].astype(jnp.bfloat16), w_ref[...],
                                preferred_element_type=jnp.float32) + b_ref[...])

    return pl.pallas_call(
        kernel,
        grid=(1,),
        in_specs=[pl.BlockSpec((S, K), lambda i: (0, 0)),
                  pl.BlockSpec((K, N), lambda i: (0, 0)),
                  pl.BlockSpec((1, N), lambda i: (0, 0))],
        out_specs=pl.BlockSpec((S, N), lambda i: (0, 0)),
        out_shape=jax.ShapeDtypeStruct((S, N), jnp.float32),
    )(x2d, w_t_bf16, bias)


def _lstm_recurrence(gates_x, w_hh_t, Hh):
    """gates_x: [T+1, B, 4H] precomputed input-side gates. Returns hiddens."""
    Tp1, B, H4 = gates_x.shape

    def kernel(gx_ref, whh_ref, hid_ref, h_ref, c_ref):
        t = pl.program_id(0)

        @pl.when(t == 0)
        def _init():
            h_ref[...] = jnp.zeros_like(h_ref)
            c_ref[...] = jnp.zeros_like(c_ref)

        gates = gx_ref[0] + jnp.dot(h_ref[...].astype(jnp.bfloat16), whh_ref[...],
                                    preferred_element_type=jnp.float32)  # [B, 4H]
        i_g = jax.nn.sigmoid(gates[:, 0 * Hh:1 * Hh])          # PyTorch order i,f,g,o
        f_g = jax.nn.sigmoid(gates[:, 1 * Hh:2 * Hh])
        g_g = jnp.tanh(gates[:, 2 * Hh:3 * Hh])
        o_g = jax.nn.sigmoid(gates[:, 3 * Hh:4 * Hh])
        c = f_g * c_ref[...] + i_g * g_g
        h = o_g * jnp.tanh(c)
        c_ref[...] = c
        h_ref[...] = h
        hid_ref[0] = h

    return pl.pallas_call(
        kernel,
        grid=(Tp1,),
        in_specs=[pl.BlockSpec((1, B, H4), lambda t: (t, 0, 0)),
                  pl.BlockSpec((Hh, H4), lambda t: (0, 0))],
        out_specs=pl.BlockSpec((1, B, Hh), lambda t: (t, 0, 0)),
        out_shape=jax.ShapeDtypeStruct((Tp1, B, Hh), jnp.float32),
        scratch_shapes=[pltpu.VMEM((B, Hh), jnp.float32),      # h
                        pltpu.VMEM((B, Hh), jnp.float32)],     # c
        compiler_params=pltpu.CompilerParams(
            dimension_semantics=("arbitrary",),                # recurrence
            vmem_limit_bytes=32 * 1024 * 1024),
    )(gates_x, w_hh_t)


# ---------------------------------------------------------------------------
# DecoderRNN: dropout(embeddings) -> [features; embeddings] -> LSTM -> Linear
# ---------------------------------------------------------------------------
def decoder_forward(features, captions, embed_tbl, w_ih, w_hh, b_ih, b_hh,
                    w_out, b_out, drop_scale):
    """features: [B, E] f32; captions: [T, B] int32. Returns [T+1, B, V] f32."""
    T, B = captions.shape
    V, E = embed_tbl.shape
    H4 = w_ih.shape[0]
    Hh = H4 // 4
    S = (T + 1) * B

    # Embedding lookup (gather) is wrapper glue; features (t=0) are not
    # dropped, matching the module (dropout is applied to embeddings only).
    emb = jnp.take(embed_tbl, captions, axis=0)                # [T, B, E]
    x_seq = jnp.concatenate([features[None, :, :], emb], axis=0)        # [T+1,B,E]
    scale = jnp.concatenate([jnp.ones((1, B, E), jnp.float32), drop_scale], 0)

    w_ih_t = w_ih.T.astype(jnp.bfloat16)                       # [E, 4H]
    w_hh_t = w_hh.T.astype(jnp.bfloat16)                       # [H, 4H]
    b_g = (b_ih + b_hh).reshape(1, H4).astype(jnp.float32)
    w_out_t = w_out.T.astype(jnp.bfloat16)                     # [H, V]
    b_o = b_out.reshape(1, V).astype(jnp.float32)

    # (1) batched input-side gate projection (dropout fused in-kernel).
    gx2d = _input_proj(x_seq.reshape(S, E), scale.reshape(S, E), w_ih_t, b_g)
    gates_x = gx2d.reshape(T + 1, B, H4)

    # (2) sequential LSTM recurrence (only the true time dependency).
    hiddens = _lstm_recurrence(gates_x, w_hh_t, Hh)            # [T+1, B, Hh]

    # (3) batched hidden -> vocab projection.
    logits2d = _linear(hiddens.reshape(S, Hh), w_out_t, b_o)   # [S, V]
    return logits2d.reshape(T + 1, B, V)


def cnn_to_rnn_forward(images, captions,
                       w_stem, b_stem, w_fc, b_fc,
                       embed_tbl, w_ih, w_hh, b_ih, b_hh, w_out, b_out,
                       enc_drop_u, dec_drop_scale):
    features = encoder_forward(images, w_stem, b_stem, w_fc, b_fc, enc_drop_u)
    return decoder_forward(features, captions, embed_tbl, w_ih, w_hh, b_ih, b_hh,
                           w_out, b_out, dec_drop_scale)


if __name__ == "__main__":
    key = jax.random.PRNGKey(0)
    ks = jax.random.split(key, 12)

    # Small, forward-consistent shapes.
    B, Cin, H, W = 2, 3, 16, 16   # RGB images (stand-in for 299x299 inception input)
    Cstem = 128                   # proxy for inception's 2048-dim pre-fc features
    E = 256                       # embed_size
    Hh = 256                      # hidden_size
    T = 8                         # caption length
    V = 512                       # TODO(synk): real vocab_size comes from vocabulary.pkl

    images = jax.random.normal(ks[0], (B, Cin, H, W), jnp.float32)
    captions = jax.random.randint(ks[1], (T, B), 0, V, dtype=jnp.int32)

    # Encoder parameters (PyTorch layouts: conv [Cout,Cin,kh,kw], Linear [out,in]).
    w_stem = jax.random.normal(ks[2], (Cstem, Cin, 3, 3), jnp.float32) * 0.1
    b_stem = jax.random.normal(ks[3], (Cstem,), jnp.float32) * 0.1
    w_fc = jax.random.normal(ks[4], (E, Cstem), jnp.float32) * 0.05
    b_fc = jax.random.normal(ks[5], (E,), jnp.float32) * 0.05

    # Decoder parameters (PyTorch layouts, LSTM gate order i,f,g,o).
    embed_tbl = jax.random.normal(ks[6], (V, E), jnp.float32) * 0.1
    w_ih = jax.random.normal(ks[7], (4 * Hh, E), jnp.float32) * 0.05
    w_hh = jax.random.normal(ks[8], (4 * Hh, Hh), jnp.float32) * 0.05
    b_ih = jnp.zeros((4 * Hh,), jnp.float32)
    b_hh = jnp.zeros((4 * Hh,), jnp.float32)
    w_out = jax.random.normal(ks[9], (V, Hh), jnp.float32) * 0.05
    b_out = jnp.zeros((V,), jnp.float32)

    # Dropout randomness (training-mode p=0.5), host-side bits.
    enc_drop_u = jax.random.uniform(ks[10], (B, E), jnp.float32)
    dec_drop_scale = (jax.random.uniform(ks[11], (T, B, E), jnp.float32) < 0.5
                      ).astype(jnp.float32) * 2.0

    out = cnn_to_rnn_forward(images, captions,
                             w_stem, b_stem, w_fc, b_fc,
                             embed_tbl, w_ih, w_hh, b_ih, b_hh, w_out, b_out,
                             enc_drop_u, dec_drop_scale)
    jax.block_until_ready(out)
    assert out.shape == (T + 1, B, V) and out.dtype == jnp.float32
    assert bool(jnp.isfinite(out).all())
    print("KERNEL_OK")
</pallas_src>

<mosaic_0001>
module attributes {stable_mosaic.version = 11 : i64} {
  func.func @kernel(%arg0: i32, %arg1: i32, %arg2: memref<1x18x18x3xbf16, #tpu.memory_space<vmem>>, %arg3: memref<9x3x128xbf16, #tpu.memory_space<vmem>>, %arg4: memref<1x128xf32, #tpu.memory_space<vmem>>, %arg5: memref<128x256xbf16, #tpu.memory_space<vmem>>, %arg6: memref<1x256xf32, #tpu.memory_space<vmem>>, %arg7: memref<1x1x256xf32, #tpu.memory_space<vmem>>, %arg8: memref<1x1x256xf32, #tpu.memory_space<vmem>>, %arg9: memref<1x128xf32, #tpu.memory_space<vmem>>) attributes {dimension_semantics = [#tpu.dimension_semantics<parallel>, #tpu.dimension_semantics<arbitrary>], iteration_bounds = array<i64: 2, 2>, scalar_prefetch = 0 : i64, scratch_operands = 1 : i64, tpu.core_type = #tpu.core_type<tc>, window_params = [{transform_indices = @transform_0, window_bounds = array<i64: 1, 18, 18, 3>}, {pipeline_mode = #tpu.pipeline_mode<synchronous>, transform_indices = @transform_1, window_bounds = array<i64: 9, 3, 128>}, {pipeline_mode = #tpu.pipeline_mode<synchronous>, transform_indices = @transform_2, window_bounds = array<i64: 1, 128>}, {pipeline_mode = #tpu.pipeline_mode<synchronous>, transform_indices = @transform_3, window_bounds = array<i64: 128, 256>}, {pipeline_mode = #tpu.pipeline_mode<synchronous>, transform_indices = @transform_4, window_bounds = array<i64: 1, 256>}, {transform_indices = @transform_5, window_bounds = array<i64: 1, 1, 256>}, {transform_indices = @transform_6, window_bounds = array<i64: 1, 1, 256>}]} {
    %c0_i32 = arith.constant 0 : i32
    %0 = arith.cmpi eq, %arg1, %c0_i32 : i32
    %1 = arith.extui %0 : i1 to i32
    %c0_i32_0 = arith.constant 0 : i32
    %2 = arith.cmpi ne, %1, %c0_i32_0 : i32
    scf.if %2 {
      %cst_72 = arith.constant 0.000000e+00 : f32
      %100 = vector.broadcast %cst_72 : f32 to vector<1x128xf32>
      %c0_73 = arith.constant 0 : index
      %c0_74 = arith.constant 0 : index
      %101 = vector.load %arg9[%c0_73, %c0_74] : memref<1x128xf32, #tpu.memory_space<vmem>>, vector<1x128xf32>
      tpu.vector_store %arg9[%c0_73, %c0_74], %100 {strides = array<i32>} : memref<1x128xf32, #tpu.memory_space<vmem>>, vector<1x128xf32>,
    } else {
    }
    %c8_i32 = arith.constant 8 : i32
    %3 = arith.muli %arg1, %c8_i32 : i32
    %4 = tpu.assume_multiple %3, 8 : i32
    %cst = arith.constant 0.000000e+00 : f32
    %5 = vector.broadcast %cst : f32 to vector<128x128xf32>
    %c0_i32_1 = arith.constant 0 : i32
    %6 = arith.addi %4, %c0_i32_1 : i32
    %c0 = arith.constant 0 : index
    %7 = arith.index_cast %6 : i32 to index
    %c0_2 = arith.constant 0 : index
    %c0_3 = arith.constant 0 : index
    %8 = vector.load %arg2[%c0, %7, %c0_2, %c0_3] : memref<1x18x18x3xbf16, #tpu.memory_space<vmem>>, vector<1x8x16x3xbf16>
    %9 = vector.shape_cast %8 : vector<1x8x16x3xbf16> to vector<8x16x3xbf16>
    %10 = vector.shape_cast %9 : vector<8x16x3xbf16> to vector<128x3xbf16>
    %c0_4 = arith.constant 0 : index
    %c0_5 = arith.constant 0 : index
    %c0_6 = arith.constant 0 : index
    %11 = vector.load %arg3[%c0_4, %c0_5, %c0_6] : memref<9x3x128xbf16, #tpu.memory_space<vmem>>, vector<1x3x128xbf16>
    %12 = vector.shape_cast %11 : vector<1x3x128xbf16> to vector<3x128xbf16>
    %cst_7 = arith.constant dense<0.000000e+00> : vector<128x128xf32>
    %13 = tpu.matmul %10, %12, %cst_7 {dimension_numbers = #tpu.dot_dimension_numbers<[1], [0], [0], [1], [0, 0, 1, 1], [], []>} : vector<128x3xbf16>, vector<3x128xbf16>, vector<128x128xf32> -> vector<128x128xf32>
    %14 = arith.addf %5, %13 : vector<128x128xf32>
    %c0_i32_8 = arith.constant 0 : i32
    %15 = arith.addi %4, %c0_i32_8 : i32
    %c0_9 = arith.constant 0 : index
    %16 = arith.index_cast %15 : i32 to index
    %c1 = arith.constant 1 : index
    %c0_10 = arith.constant 0 : index
    %17 = vector.load %arg2[%c0_9, %16, %c1, %c0_10] : memref<1x18x18x3xbf16, #tpu.memory_space<vmem>>, vector<1x8x16x3xbf16>
    %18 = vector.shape_cast %17 : vector<1x8x16x3xbf16> to vector<8x16x3xbf16>
    %19 = vector.shape_cast %18 : vector<8x16x3xbf16> to vector<128x3xbf16>
    %c1_11 = arith.constant 1 : index
    %c0_12 = arith.constant 0 : index
    %c0_13 = arith.constant 0 : index
    %20 = vector.load %arg3[%c1_11, %c0_12, %c0_13] : memref<9x3x128xbf16, #tpu.memory_space<vmem>>, vector<1x3x128xbf16>
    %21 = vector.shape_cast %20 : vector<1x3x128xbf16> to vector<3x128xbf16>
    %cst_14 = arith.constant dense<0.000000e+00> : vector<128x128xf32>
    %22 = tpu.matmul %19, %21, %cst_14 {dimension_numbers = #tpu.dot_dimension_numbers<[1], [0], [0], [1], [0, 0, 1, 1], [], []>} : vector<128x3xbf16>, vector<3x128xbf16>, vector<128x128xf32> -> vector<128x128xf32>
    %23 = arith.addf %14, %22 : vector<128x128xf32>
    %c0_i32_15 = arith.constant 0 : i32
    %24 = arith.addi %4, %c0_i32_15 : i32
    %c0_16 = arith.constant 0 : index
    %25 = arith.index_cast %24 : i32 to index
    %c2 = arith.constant 2 : index
    %c0_17 = arith.constant 0 : index
    %26 = vector.load %arg2[%c0_16, %25, %c2, %c0_17] : memref<1x18x18x3xbf16, #tpu.memory_space<vmem>>, vector<1x8x16x3xbf16>
    %27 = vector.shape_cast %26 : vector<1x8x16x3xbf16> to vector<8x16x3xbf16>
    %28 = vector.shape_cast %27 : vector<8x16x3xbf16> to vector<128x3xbf16>
    %c2_18 = arith.constant 2 : index
    %c0_19 = arith.constant 0 : index
    %c0_20 = arith.constant 0 : index
    %29 = vector.load %arg3[%c2_18, %c0_19, %c0_20] : memref<9x3x128xbf16, #tpu.memory_space<vmem>>, vector<1x3x128xbf16>
    %30 = vector.shape_cast %29 : vector<1x3x128xbf16> to vector<3x128xbf16>
    %cst_21 = arith.constant dense<0.000000e+00> : vector<128x128xf32>
    %31 = tpu.matmul %28, %30, %cst_21 {dimension_numbers = #tpu.dot_dimension_numbers<[1], [0], [0], [1], [0, 0, 1, 1], [], []>} : vector<128x3xbf16>, vector<3x128xbf16>, vector<128x128xf32> -> vector<128x128xf32>
    %32 = arith.addf %23, %31 : vector<128x128xf32>
    %c1_i32 = arith.constant 1 : i32
    %33 = arith.addi %4, %c1_i32 : i32
    %c0_22 = arith.constant 0 : index
    %34 = arith.index_cast %33 : i32 to index
    %c0_23 = arith.constant 0 : index
    %c0_24 = arith.constant 0 : index
    %35 = vector.load %arg2[%c0_22, %34, %c0_23, %c0_24] : memref<1x18x18x3xbf16, #tpu.memory_space<vmem>>, vector<1x8x16x3xbf16>
    %36 = vector.shape_cast %35 : vector<1x8x16x3xbf16> to vector<8x16x3xbf16>
    %37 = vector.shape_cast %36 : vector<8x16x3xbf16> to vector<128x3xbf16>
    %c3 = arith.constant 3 : index
    %c0_25 = arith.constant 0 : index
    %c0_26 = arith.constant 0 : index
    %38 = vector.load %arg3[%c3, %c0_25, %c0_26] : memref<9x3x128xbf16, #tpu.memory_space<vmem>>, vector<1x3x128xbf16>
    %39 = vector.shape_cast %38 : vector<1x3x128xbf16> to vector<3x128xbf16>
    %cst_27 = arith.constant dense<0.000000e+00> : vector<128x128xf32>
    %40 = tpu.matmul %37, %39, %cst_27 {dimension_numbers = #tpu.dot_dimension_numbers<[1], [0], [0], [1], [0, 0, 1, 1], [], []>} : vector<128x3xbf16>, vector<3x128xbf16>, vector<128x128xf32> -> vector<128x128xf32>
    %41 = arith.addf %32, %40 : vector<128x128xf32>
    %c1_i32_28 = arith.constant 1 : i32
    %42 = arith.addi %4, %c1_i32_28 : i32
    %c0_29 = arith.constant 0 : index
    %43 = arith.index_cast %42 : i32 to index
    %c1_30 = arith.constant 1 : index
    %c0_31 = arith.constant 0 : index
    %44 = vector.load %arg2[%c0_29, %43, %c1_30, %c0_31] : memref<1x18x18x3xbf16, #tpu.memory_space<vmem>>, vector<1x8x16x3xbf16>
    %45 = vector.shape_cast %44 : vector<1x8x16x3xbf16> to vector<8x16x3xbf16>
    %46 = vector.shape_cast %45 : vector<8x16x3xbf16> to vector<128x3xbf16>
    %c4 = arith.constant 4 : index
    %c0_32 = arith.constant 0 : index
    %c0_33 = arith.constant 0 : index
    %47 = vector.load %arg3[%c4, %c0_32, %c0_33] : memref<9x3x128xbf16, #tpu.memory_space<vmem>>, vector<1x3x128xbf16>
    %48 = vector.shape_cast %47 : vector<1x3x128xbf16> to vector<3x128xbf16>
    %cst_34 = arith.constant dense<0.000000e+00> : vector<128x128xf32>
    %49 = tpu.matmul %46, %48, %cst_34 {dimension_numbers = #tpu.dot_dimension_numbers<[1], [0], [0], [1], [0, 0, 1, 1], [], []>} : vector<128x3xbf16>, vector<3x128xbf16>, vector<128x128xf32> -> vector<128x128xf32>
    %50 = arith.addf %41, %49 : vector<128x128xf32>
    %c1_i32_35 = arith.constant 1 : i32
    %51 = arith.addi %4, %c1_i32_35 : i32
    %c0_36 = arith.constant 0 : index
    %52 = arith.index_cast %51 : i32 to index
    %c2_37 = arith.constant 2 : index
    %c0_38 = arith.constant 0 : index
    %53 = vector.load %arg2[%c0_36, %52, %c2_37, %c0_38] : memref<1x18x18x3xbf16, #tpu.memory_space<vmem>>, vector<1x8x16x3xbf16>
    %54 = vector.shape_cast %53 : vector<1x8x16x3xbf16> to vector<8x16x3xbf16>
    %55 = vector.shape_cast %54 : vector<8x16x3xbf16> to vector<128x3xbf16>
    %c5 = arith.constant 5 : index
    %c0_39 = arith.constant 0 : index
    %c0_40 = arith.constant 0 : index
    %56 = vector.load %arg3[%c5, %c0_39, %c0_40] : memref<9x3x128xbf16, #tpu.memory_space<vmem>>, vector<1x3x128xbf16>
    %57 = vector.shape_cast %56 : vector<1x3x128xbf16> to vector<3x128xbf16>
    %cst_41 = arith.constant dense<0.000000e+00> : vector<128x128xf32>
    %58 = tpu.matmul %55, %57, %cst_41 {dimension_numbers = #tpu.dot_dimension_numbers<[1], [0], [0], [1], [0, 0, 1, 1], [], []>} : vector<128x3xbf16>, vector<3x128xbf16>, vector<128x128xf32> -> vector<128x128xf32>
    %59 = arith.addf %50, %58 : vector<128x128xf32>
    %c2_i32 = arith.constant 2 : i32
    %60 = arith.addi %4, %c2_i32 : i32
    %c0_42 = arith.constant 0 : index
    %61 = arith.index_cast %60 : i32 to index
    %c0_43 = arith.constant 0 : index
    %c0_44 = arith.constant 0 : index
    %62 = vector.load %arg2[%c0_42, %61, %c0_43, %c0_44] : memref<1x18x18x3xbf16, #tpu.memory_space<vmem>>, vector<1x8x16x3xbf16>
    %63 = vector.shape_cast %62 : vector<1x8x16x3xbf16> to vector<8x16x3xbf16>
    %64 = vector.shape_cast %63 : vector<8x16x3xbf16> to vector<128x3xbf16>
    %c6 = arith.constant 6 : index
    %c0_45 = arith.constant 0 : index
    %c0_46 = arith.constant 0 : index
    %65 = vector.load %arg3[%c6, %c0_45, %c0_46] : memref<9x3x128xbf16, #tpu.memory_space<vmem>>, vector<1x3x128xbf16>
    %66 = vector.shape_cast %65 : vector<1x3x128xbf16> to vector<3x128xbf16>
    %cst_47 = arith.constant dense<0.000000e+00> : vector<128x128xf32>
    %67 = tpu.matmul %64, %66, %cst_47 {dimension_numbers = #tpu.dot_dimension_numbers<[1], [0], [0], [1], [0, 0, 1, 1], [], []>} : vector<128x3xbf16>, vector<3x128xbf16>, vector<128x128xf32> -> vector<128x128xf32>
    %68 = arith.addf %59, %67 : vector<128x128xf32>
    %c2_i32_48 = arith.constant 2 : i32
    %69 = arith.addi %4, %c2_i32_48 : i32
    %c0_49 = arith.constant 0 : index
    %70 = arith.index_cast %69 : i32 to index
    %c1_50 = arith.constant 1 : index
    %c0_51 = arith.constant 0 : index
    %71 = vector.load %arg2[%c0_49, %70, %c1_50, %c0_51] : memref<1x18x18x3xbf16, #tpu.memory_space<vmem>>, vector<1x8x16x3xbf16>
    %72 = vector.shape_cast %71 : vector<1x8x16x3xbf16> to vector<8x16x3xbf16>
    %73 = vector.shape_cast %72 : vector<8x16x3xbf16> to vector<128x3xbf16>
    %c7 = arith.constant 7 : index
    %c0_52 = arith.constant 0 : index
    %c0_53 = arith.constant 0 : index
    %74 = vector.load %arg3[%c7, %c0_52, %c0_53] : memref<9x3x128xbf16, #tpu.memory_space<vmem>>, vector<1x3x128xbf16>
    %75 = vector.shape_cast %74 : vector<1x3x128xbf16> to vector<3x128xbf16>
    %cst_54 = arith.constant dense<0.000000e+00> : vector<128x128xf32>
    %76 = tpu.matmul %73, %75, %cst_54 {dimension_numbers = #tpu.dot_dimension_numbers<[1], [0], [0], [1], [0, 0, 1, 1], [], []>} : vector<128x3xbf16>, vector<3x128xbf16>, vector<128x128xf32> -> vector<128x128xf32>
    %77 = arith.addf %68, %76 : vector<128x128xf32>
    %c2_i32_55 = arith.constant 2 : i32
    %78 = arith.addi %4, %c2_i32_55 : i32
    %c0_56 = arith.constant 0 : index
    %79 = arith.index_cast %78 : i32 to index
    %c2_57 = arith.constant 2 : index
    %c0_58 = arith.constant 0 : index
    %80 = vector.load %arg2[%c0_56, %79, %c2_57, %c0_58] : memref<1x18x18x3xbf16, #tpu.memory_space<vmem>>, vector<1x8x16x3xbf16>
    %81 = vector.shape_cast %80 : vector<1x8x16x3xbf16> to vector<8x16x3xbf16>
    %82 = vector.shape_cast %81 : vector<8x16x3xbf16> to vector<128x3xbf16>
    %c8 = arith.constant 8 : index
    %c0_59 = arith.constant 0 : index
    %c0_60 = arith.constant 0 : index
    %83 = vector.load %arg3[%c8, %c0_59, %c0_60] : memref<9x3x128xbf16, #tpu.memory_space<vmem>>, vector<1x3x128xbf16>
    %84 = vector.shape_cast %83 : vector<1x3x128xbf16> to vector<3x128xbf16>
    %cst_61 = arith.constant dense<0.000000e+00> : vector<128x128xf32>
    %85 = tpu.matmul %82, %84, %cst_61 {dimension_numbers = #tpu.dot_dimension_numbers<[1], [0], [0], [1], [0, 0, 1, 1], [], []>} : vector<128x3xbf16>, vector<3x128xbf16>, vector<128x128xf32> -> vector<128x128xf32>
    %86 = arith.addf %77, %85 : vector<128x128xf32>
    %c0_62 = arith.constant 0 : index
    %c0_63 = arith.constant 0 : index
    %87 = vector.load %arg4[%c0_62, %c0_63] : memref<1x128xf32, #tpu.memory_space<vmem>>, vector<1x128xf32>
    %88 = vector.broadcast %87 : vector<1x128xf32> to vector<128x128xf32>
    %89 = arith.addf %86, %88 : vector<128x128xf32>
    %cst_64 = arith.constant 0.000000e+00 : f32
    %90 = vector.broadcast %cst_64 : f32 to vector<128x128xf32>
    %91 = arith.maximumf %89, %90 : vector<128x128xf32>
    %c0_65 = arith.constant 0 : index
    %c0_66 = arith.constant 0 : index
    %92 = vector.load %arg9[%c0_65, %c0_66] : memref<1x128xf32, #tpu.memory_space<vmem>>, vector<1x128xf32>
    %cst_67 = arith.constant dense<0.000000e+00> : vector<128xf32>
    %93 = vector.multi_reduction <add>, %91, %cst_67 [0] : vector<128x128xf32> to vector<128xf32>
    %94 = vector.shape_cast %93 : vector<128xf32> to vector<1x128xf32>
    %95 = arith.addf %92, %94 : vector<1x128xf32>
    %c0_68 = arith.constant 0 : index
    %c0_69 = arith.constant 0 : index
    %96 = vector.load %arg9[%c0_68, %c0_69] : memref<1x128xf32, #tpu.memory_space<vmem>>, vector<1x128xf32>
    tpu.vector_store %arg9[%c0_68, %c0_69], %95 {strides = array<i32>} : memref<1x128xf32, #tpu.memory_space<vmem>>, vector<1x128xf32>,
    %c1_i32_70 = arith.constant 1 : i32
    %97 = arith.cmpi eq, %arg1, %c1_i32_70 : i32
    %98 = arith.extui %97 : i1 to i32
    %c0_i32_71 = arith.constant 0 : i32
    %99 = arith.cmpi ne, %98, %c0_i32_71 : i32
    scf.if %99 {
      %c0_72 = arith.constant 0 : index
      %c0_73 = arith.constant 0 : index
      %100 = vector.load %arg9[%c0_72, %c0_73] : memref<1x128xf32, #tpu.memory_space<vmem>>, vector<1x128xf32>
      %cst_74 = arith.constant 3.906250e-03 : f32
      %101 = vector.broadcast %cst_74 : f32 to vector<1x128xf32>
      %102 = arith.mulf %100, %101 : vector<1x128xf32>
      %103 = arith.truncf %102 : vector<1x128xf32> to vector<1x128xbf16>
      %c0_75 = arith.constant 0 : index
      %c0_76 = arith.constant 0 : index
      %104 = vector.load %arg5[%c0_75, %c0_76] : memref<128x256xbf16, #tpu.memory_space<vmem>>, vector<128x256xbf16>
      %cst_77 = arith.constant dense<0.000000e+00> : vector<1x256xf32>
      %105 = tpu.matmul %103, %104, %cst_77 {dimension_numbers = #tpu.dot_dimension_numbers<[1], [0], [0], [1], [0, 0, 1, 1], [], []>} : vector<1x128xbf16>, vector<128x256xbf16>, vector<1x256xf32> -> vector<1x256xf32>
      %c0_78 = arith.constant 0 : index
      %c0_79 = arith.constant 0 : index
      %106 = vector.load %arg6[%c0_78, %c0_79] : memref<1x256xf32, #tpu.memory_space<vmem>>, vector<1x256xf32>
      %107 = arith.addf %105, %106 : vector<1x256xf32>
      %cst_80 = arith.constant 0.000000e+00 : f32
      %108 = vector.broadcast %cst_80 : f32 to vector<1x256xf32>
      %109 = arith.maximumf %107, %108 : vector<1x256xf32>
      %c0_81 = arith.constant 0 : index
      %c0_82 = arith.constant 0 : index
      %c0_83 = arith.constant 0 : index
      %110 = vector.load %arg7[%c0_81, %c0_82, %c0_83] : memref<1x1x256xf32, #tpu.memory_space<vmem>>, vector<1x1x256xf32>
      %111 = vector.shape_cast %110 : vector<1x1x256xf32> to vector<1x256xf32>
      %cst_84 = arith.constant 5.000000e-01 : f32
      %112 = vector.broadcast %cst_84 : f32 to vector<1x256xf32>
      %113 = arith.cmpf olt, %111, %112 : vector<1x256xf32>
      %cst_85 = arith.constant 2.000000e+00 : f32
      %114 = vector.broadcast %cst_85 : f32 to vector<1x256xf32>
      %115 = arith.mulf %109, %114 : vector<1x256xf32>
      %cst_86 = arith.constant 0.000000e+00 : f32
      %116 = vector.broadcast %cst_86 : f32 to vector<1x256xf32>
      %117 = arith.select %113, %115, %116 : vector<1x256xi1>, vector<1x256xf32>
      %c0_87 = arith.constant 0 : index
      %c0_88 = arith.constant 0 : index
      %c0_89 = arith.constant 0 : index
      %118 = vector.load %arg8[%c0_87, %c0_88, %c0_89] : memref<1x1x256xf32, #tpu.memory_space<vmem>>, vector<1x1x256xf32>
      %119 = vector.shape_cast %118 : vector<1x1x256xf32> to vector<1x256xf32>
      %120 = vector.shape_cast %117 : vector<1x256xf32> to vector<1x1x256xf32>
      tpu.vector_store %arg8[%c0_87, %c0_88, %c0_89], %120 {strides = array<i32>} : memref<1x1x256xf32, #tpu.memory_space<vmem>>, vector<1x1x256xf32>,
    } else {
    }
    return
  }
  func.func @transform_0(%arg0: i32, %arg1: i32) -> (i32, i32, i32, i32) {
    %c0_i32 = arith.constant 0 : i32
    %c0_i32_0 = arith.constant 0 : i32
    %c0_i32_1 = arith.constant 0 : i32
    %c0_i32_2 = arith.constant 0 : i32
    return %arg0, %c0_i32, %c0_i32_0, %c0_i32_1 : i32, i32, i32, i32
  }
  func.func @transform_1(%arg0: i32, %arg1: i32) -> (i32, i32, i32) {
    %c0_i32 = arith.constant 0 : i32
    %c0_i32_0 = arith.constant 0 : i32
    %c0_i32_1 = arith.constant 0 : i32
    %c0_i32_2 = arith.constant 0 : i32
    return %c0_i32, %c0_i32_0, %c0_i32_1 : i32, i32, i32
  }
  func.func @transform_2(%arg0: i32, %arg1: i32) -> (i32, i32) {
    %c0_i32 = arith.constant 0 : i32
    %c0_i32_0 = arith.constant 0 : i32
    %c0_i32_1 = arith.constant 0 : i32
    return %c0_i32, %c0_i32_0 : i32, i32
  }
  func.func @transform_3(%arg0: i32, %arg1: i32) -> (i32, i32) {
    %c0_i32 = arith.constant 0 : i32
    %c0_i32_0 = arith.constant 0 : i32
    %c0_i32_1 = arith.constant 0 : i32
    return %c0_i32, %c0_i32_0 : i32, i32
  }
  func.func @transform_4(%arg0: i32, %arg1: i32) -> (i32, i32) {
    %c0_i32 = arith.constant 0 : i32
    %c0_i32_0 = arith.constant 0 : i32
    %c0_i32_1 = arith.constant 0 : i32
    return %c0_i32, %c0_i32_0 : i32, i32
  }
  func.func @transform_5(%arg0: i32, %arg1: i32) -> (i32, i32, i32) {
    %c0_i32 = arith.constant 0 : i32
    %c0_i32_0 = arith.constant 0 : i32
    %c0_i32_1 = arith.constant 0 : i32
    return %arg0, %c0_i32, %c0_i32_0 : i32, i32, i32
  }
  func.func @transform_6(%arg0: i32, %arg1: i32) -> (i32, i32, i32) {
    %c0_i32 = arith.constant 0 : i32
    %c0_i32_0 = arith.constant 0 : i32
    %c0_i32_1 = arith.constant 0 : i32
    return %arg0, %c0_i32, %c0_i32_0 : i32, i32, i32
  }
}

</mosaic_0001>

<llo_original>
// kernel: tpu_custom_call.1
$region0: #{tpu_custom_call.1}
  #allocation0 [shape = 'u32[]', space=smem, size = 0x4, offset = 0x4, fixed_abs, tag = 'smem constant byte address 0x4 - core index']
  #allocation1 [shape = 'u32[144,128]{1,0:T(1,128)}', space=vmem, size = 0x12000, scoped, tag = 'internal scratch']
  #allocation2 [shape = 'f32[1,128]{1,0:T(1,128)}', space=vmem, size = 0x200, scoped, tag = 'scratch operand']
  %s0 = inlined_call_operand.vmem [shape: bf16[2,18,18,3], index: 0, kind: input, shape index: {}]
  %s1 = inlined_call_operand.vmem [shape: bf16[9,3,128], index: 1, kind: input, shape index: {}]
  %s2 = inlined_call_operand.vmem [shape: f32[1,128], index: 2, kind: input, shape index: {}]
  %s3 = inlined_call_operand.vmem [shape: bf16[128,256], index: 3, kind: input, shape index: {}]
  %s4 = inlined_call_operand.vmem [shape: f32[1,256], index: 4, kind: input, shape index: {}]
  %s5 = inlined_call_operand.vmem [shape: f32[2,1,256], index: 5, kind: input, shape index: {}]
  %s6 = inlined_call_operand.hbm [shape: f32[2,1,256], index: 6, kind: output, shape index: {}]
  %s7 = sld [smem:[#allocation0]]
  $region65: #{tpu_custom_call.1} parent=0
    _
  %s9 = ssub.s32 1, %s7
  %s10 = scalar_select 0, %s9, %s7
  $region1: #{tpu_custom_call.1} parent=0
    #allocation3 [shape = 'u8[2048]{0}', space=vmem, size = 0x800, scoped, tag = 'output window, operand 0']
    #allocation4 [shape = 's32[2]{0}', space=sflag, size = 0x8, scoped, tag = 'scoped memory for tpu_custom_call.1']
    %11 = vsyncpa [#allocation4], 0
    %s12 = scalar_lea.sflag [#allocation4], 1
    %13 = vsyncpa %s12, 0
    loop: start=0, step=1, limit=6
    $region2: #{tpu_custom_call.1} parent=1 // loop_pre_header
      _
    $region3: #{tpu_custom_call.1} parent=1 // loop_header
      %s15 = sphi 0, %s19
      %p16 = scmp.ge.s32.totalorder %s15, 6
      %s22 = sphi 0, %s34
      %s23 = sphi 0, %s30
      %s24 = sphi 0, %s22
      %s25 = sphi 0, %s23
      %s26 = sphi 0, %s24
      %s27 = sphi 0, %s25
      %s37 = sphi 0, %s39
      %s40 = sphi 0, %s37
      %s41 = sphi 0, %s40
      %s57 = sphi 0, %s41
      %s61 = sphi 0, %s61
      %s63 = sphi 0, %s61
      %s64 = sphi 0, %s63
      %s78 = sphi 0, %s64
      %s82 = sphi 0, %s82
      %s84 = sphi 0, %s82
      %s85 = sphi 0, %s84
      %s99 = sphi 0, %s85
      %s103 = sphi 0, %s103
      %s105 = sphi 0, %s103
      %s106 = sphi 0, %s105
      %s120 = sphi 0, %s106
      %s124 = sphi 0, %s124
      %s126 = sphi 0, %s124
      %s127 = sphi 0, %s126
      %s141 = sphi 0, %s127
      %s147 = sphi 0, %s149
      %s150 = sphi 0, %s147
      %s151 = sphi 0, %s150
      %s167 = sphi 0, %s151
      %s173 = sphi 0, %s175
      %s176 = sphi 0, %s173
      %s177 = sphi 0, %s176
      %s193 = sphi 0, %s177
    $region4: #{tpu_custom_call.1} parent=1 // loop_header_branch
      %18 = sbr.rel (%p16) target = $region8
    $region5: #{tpu_custom_call.1} parent=1 // loop_body
      %s20 = ssub.s32 %s15, 1
      %s21 = ssub.s32 %s15, 2
      %s28 = sadd.s32 1, %s23
      %p29 = scmp.ge.s32.totalorder %s28, 2
      %s30 = scalar_select %p29, 0, %s28
      %s31 = sadd.s32 1, %s22
      %s32 = scalar_select %p29, %s31, %s22
      %p33 = scmp.ge.s32.totalorder %s32, 2
      %s34 = scalar_select %p33, 0, %s32
      %s35 = ssub.s32 %s22, %s34
      %p36 = scmp.eq.s32.totalorder %s35, 0
      %s38 = sadd.s32 %s37, 1
      %s39 = scalar_select %p36, %s37, %s38
      %p42 = pneg %p36
      %p43 = scmp.eq.s32.totalorder %s15, 3
      %p44 = por %p42, %p43
      %p45 = scmp.ne.s32.totalorder %s37, %s40
      %p46 = scmp.eq.s32.totalorder %s15, 0
      %p47 = por %p45, %p46
      %p48 = scmp.ne.s32.totalorder %s37, %s40
      %p49 = scmp.eq.s32.totalorder %s20, 3
      %p50 = por %p48, %p49
      %p51 = scmp.ne.s32.totalorder %s40, %s41
      %p52 = scmp.eq.s32.totalorder %s20, 0
      %p53 = por %p51, %p52
      %p54 = scmp.ne.s32.totalorder %s40, %s41
      %p55 = scmp.eq.s32.totalorder %s21, 3
      %p56 = por %p54, %p55
      %p58 = scmp.ne.s32.totalorder %s41, %s57
      %p59 = scmp.eq.s32.totalorder %s21, 0
      %p60 = por %p58, %p59
      %s62 = sadd.s32 %s61, 1
      %p65 = scmp.eq.s32.totalorder %s15, 3
      %p66 = scmp.ne.s32.totalorder %s61, %s63
      %p67 = scmp.eq.s32.totalorder %s15, 0
      %p68 = por %p66, %p67
      %p69 = scmp.ne.s32.totalorder %s61, %s63
      %p70 = scmp.eq.s32.totalorder %s20, 3
      %p71 = por %p69, %p70
      %p72 = scmp.ne.s32.totalorder %s63, %s64
      %p73 = scmp.eq.s32.totalorder %s20, 0
      %p74 = por %p72, %p73
      %p75 = scmp.ne.s32.totalorder %s63, %s64
      %p76 = scmp.eq.s32.totalorder %s21, 3
      %p77 = por %p75, %p76
      %p79 = scmp.ne.s32.totalorder %s64, %s78
      %p80 = scmp.eq.s32.totalorder %s21, 0
      %p81 = por %p79, %p80
      %s83 = sadd.s32 %s82, 1
      %p86 = scmp.eq.s32.totalorder %s15, 3
      %p87 = scmp.ne.s32.totalorder %s82, %s84
      %p88 = scmp.eq.s32.totalorder %s15, 0
      %p89 = por %p87, %p88
      %p90 = scmp.ne.s32.totalorder %s82, %s84
      %p91 = scmp.eq.s32.totalorder %s20, 3
      %p92 = por %p90, %p91
      %p93 = scmp.ne.s32.totalorder %s84, %s85
      %p94 = scmp.eq.s32.totalorder %s20, 0
      %p95 = por %p93, %p94
      %p96 = scmp.ne.s32.totalorder %s84, %s85
      %p97 = scmp.eq.s32.totalorder %s21, 3
      %p98 = por %p96, %p97
      %p100 = scmp.ne.s32.totalorder %s85, %s99
      %p101 = scmp.eq.s32.totalorder %s21, 0
      %p102 = por %p100, %p101
      %s104 = sadd.s32 %s103, 1
      %p107 = scmp.eq.s32.totalorder %s15, 3
      %p108 = scmp.ne.s32.totalorder %s103, %s105
      %p109 = scmp.eq.s32.totalorder %s15, 0
      %p110 = por %p108, %p109
      %p111 = scmp.ne.s32.totalorder %s103, %s105
      %p112 = scmp.eq.s32.totalorder %s20, 3
      %p113 = por %p111, %p112
      %p114 = scmp.ne.s32.totalorder %s105, %s106
      %p115 = scmp.eq.s32.totalorder %s20, 0
      %p116 = por %p114, %p115
      %p117 = scmp.ne.s32.totalorder %s105, %s106
      %p118 = scmp.eq.s32.totalorder %s21, 3
      %p119 = por %p117, %p118
      %p121 = scmp.ne.s32.totalorder %s106, %s120
      %p122 = scmp.eq.s32.totalorder %s21, 0
      %p123 = por %p121, %p122
      %s125 = sadd.s32 %s124, 1
      %p128 = scmp.eq.s32.totalorder %s15, 3
      %p129 = scmp.ne.s32.totalorder %s124, %s126
      %p130 = scmp.eq.s32.totalorder %s15, 0
      %p131 = por %p129, %p130
      %p132 = scmp.ne.s32.totalorder %s124, %s126
      %p133 = scmp.eq.s32.totalorder %s20, 3
      %p134 = por %p132, %p133
      %p135 = scmp.ne.s32.totalorder %s126, %s127
      %p136 = scmp.eq.s32.totalorder %s20, 0
      %p137 = por %p135, %p136
      %p138 = scmp.ne.s32.totalorder %s126, %s127
      %p139 = scmp.eq.s32.totalorder %s21, 3
      %p140 = por %p138, %p139
      %p142 = scmp.ne.s32.totalorder %s127, %s141
      %p143 = scmp.eq.s32.totalorder %s21, 0
      %p144 = por %p142, %p143
      %s145 = ssub.s32 %s22, %s34
      %p146 = scmp.eq.s32.totalorder %s145, 0
      %s148 = sadd.s32 %s147, 1
      %s149 = scalar_select %p146, %s147, %s148
      %p152 = pneg %p146
      %p153 = scmp.eq.s32.totalorder %s15, 3
      %p154 = por %p152, %p153
      %p155 = scmp.ne.s32.totalorder %s147, %s150
      %p156 = scmp.eq.s32.totalorder %s15, 0
      %p157 = por %p155, %p156
      %p158 = scmp.ne.s32.totalorder %s147, %s150
      %p159 = scmp.eq.s32.totalorder %s20, 3
      %p160 = por %p158, %p159
      %p161 = scmp.ne.s32.totalorder %s150, %s151
      %p162 = scmp.eq.s32.totalorder %s20, 0
      %p163 = por %p161, %p162
      %p164 = scmp.ne.s32.totalorder %s150, %s151
      %p165 = scmp.eq.s32.totalorder %s21, 3
      %p166 = por %p164, %p165
      %p168 = scmp.ne.s32.totalorder %s151, %s167
      %p169 = scmp.eq.s32.totalorder %s21, 0
      %p170 = por %p168, %p169
      %s171 = ssub.s32 %s22, %s34
      %p172 = scmp.eq.s32.totalorder %s171, 0
      %s174 = sadd.s32 %s173, 1
      %s175 = scalar_select %p172, %s173, %s174
      %p178 = pneg %p172
      %p179 = scmp.eq.s32.totalorder %s15, 3
      %p180 = por %p178, %p179
      %p181 = scmp.ne.s32.totalorder %s173, %s176
      %p182 = scmp.eq.s32.totalorder %s15, 0
      %p183 = por %p181, %p182
      %p184 = scmp.ne.s32.totalorder %s173, %s176
      %p185 = scmp.eq.s32.totalorder %s20, 3
      %p186 = por %p184, %p185
      %p187 = scmp.ne.s32.totalorder %s176, %s177
      %p188 = scmp.eq.s32.totalorder %s20, 0
      %p189 = por %p187, %p188
      %p190 = scmp.ne.s32.totalorder %s176, %s177
      %p191 = scmp.eq.s32.totalorder %s21, 3
      %p192 = por %p190, %p191
      %p194 = scmp.ne.s32.totalorder %s177, %s193
      %p195 = scmp.eq.s32.totalorder %s21, 0
      %p196 = por %p194, %p195
      %p197 = scmp.le.s32.totalorder 1, %s15
      %p198 = scmp.lt.s32.totalorder %s15, 5
      %p199 = pnand %p197, %p198
      %p200 = pneg %p199
      // Predicated region
      $region9: #{tpu_custom_call.1} parent=5 // pred_check
        _
      $region10: #{tpu_custom_call.1} parent=5 // pred_check_branch
        %202 = sbr.rel (%p199) target = $region12
      $region11: #{tpu_custom_call.1} parent=5 // pred_region
        %s203 = ssub.s32 %s15, 1
        // Predicated region
        $region13: #{tpu_custom_call.1} parent=11 // pred_check
          %p204 = pneg %p74
        $region14: #{tpu_custom_call.1} parent=11 // pred_check_branch
          %206 = sbr.rel (%p204) target = $region16
        $region15: #{tpu_custom_call.1} parent=11 // pred_region
          _
        $region16: #{tpu_custom_call.1} parent=11 // pred_fallthru
          _
        // Predicated region
        $region17: #{tpu_custom_call.1} parent=11 // pred_check
          %p207 = pneg %p95
        $region18: #{tpu_custom_call.1} parent=11 // pred_check_branch
          %209 = sbr.rel (%p207) target = $region20
        $region19: #{tpu_custom_call.1} parent=11 // pred_region
          _
        $region20: #{tpu_custom_call.1} parent=11 // pred_fallthru
          _
        // Predicated region
        $region21: #{tpu_custom_call.1} parent=11 // pred_check
          %p210 = pneg %p116
        $region22: #{tpu_custom_call.1} parent=11 // pred_check_branch
          %212 = sbr.rel (%p210) target = $region24
        $region23: #{tpu_custom_call.1} parent=11 // pred_region
          _
        $region24: #{tpu_custom_call.1} parent=11 // pred_fallthru
          _
        // Predicated region
        $region25: #{tpu_custom_call.1} parent=11 // pred_check
          %p213 = pneg %p137
        $region26: #{tpu_custom_call.1} parent=11 // pred_check_branch
          %215 = sbr.rel (%p213) target = $region28
        $region27: #{tpu_custom_call.1} parent=11 // pred_region
          _
        $region28: #{tpu_custom_call.1} parent=11 // pred_fallthru
          _
      $region12: #{tpu_custom_call.1} parent=5 // pred_fallthru
        _
      %p216 = scmp.lt.s32.totalorder %s15, 4
      // Predicated region
      $region29: #{tpu_custom_call.1} parent=5 // pred_check
        %p217 = pneg %p216
      $region30: #{tpu_custom_call.1} parent=5 // pred_check_branch
        %219 = sbr.rel (%p217) target = $region32
      $region31: #{tpu_custom_call.1} parent=5 // pred_region
        // Predicated region
        $region33: #{tpu_custom_call.1} parent=31 // pred_check
          %p220 = pneg %p47
        $region34: #{tpu_custom_call.1} parent=31 // pred_check_branch
          %222 = sbr.rel (%p220) target = $region36
        $region35: #{tpu_custom_call.1} parent=31 // pred_region
          %p223 = scmp.lt.s32.totalorder %s22, 1
          %s224 = scalar_select %p223, %s22, 1
          %s225 = smul.addr %s224, 54
          %s226 = smul.addr %s225, 4
          %s227 = scalar_lea.vmem %s0, %s226
        $region36: #{tpu_custom_call.1} parent=31 // pred_fallthru
          _
        // Predicated region
        $region37: #{tpu_custom_call.1} parent=31 // pred_check
          %p228 = pneg %p157
        $region38: #{tpu_custom_call.1} parent=31 // pred_check_branch
          %230 = sbr.rel (%p228) target = $region40
        $region39: #{tpu_custom_call.1} parent=31 // pred_region
          %p231 = scmp.lt.s32.totalorder %s22, 1
          %s232 = scalar_select %p231, %s22, 1
          %s233 = smul.addr %s232, 2
          %s234 = scalar_lea.vmem %s5, %s233
        $region40: #{tpu_custom_call.1} parent=31 // pred_fallthru
          _
      $region32: #{tpu_custom_call.1} parent=5 // pred_fallthru
        _
      %p235 = scmp.le.s32.totalorder 1, %s15
      %p236 = scmp.lt.s32.totalorder %s15, 5
      %p237 = pnand %p235, %p236
      %p238 = pneg %p237
      // Predicated region
      $region41: #{tpu_custom_call.1} parent=5 // pred_check
        _
      $region42: #{tpu_custom_call.1} parent=5 // pred_check_branch
        %240 = sbr.rel (%p237) target = $region44
      $region43: #{tpu_custom_call.1} parent=5 // pred_region
        %s241 = ssub.s32 %s15, 1
        %p242 = scmp.lt.s32.totalorder %s24, 1
        %s243 = scalar_select %p242, %s24, 1
        %s244 = smul.addr %s243, 54
        %s245 = smul.addr %s244, 4
        %s246 = scalar_lea.vmem %s0, %s245
        %p247 = pneg %p53
        %p248 = pneg %p50
        %p249 = pneg %p74
        %p250 = pneg %p71
        %p251 = pneg %p95
        %p252 = pneg %p92
        %p253 = pneg %p116
        %p254 = pneg %p113
        %p255 = pneg %p137
        %p256 = pneg %p134
        %p257 = scmp.lt.s32.totalorder %s24, 1
        %s258 = scalar_select %p257, %s24, 1
        %s259 = smul.addr %s258, 2
        %s260 = scalar_lea.vmem %s5, %s259
        %p261 = pneg %p163
        %p262 = pneg %p160
        %p263 = pneg %p189
        %p264 = pneg %p186
        %s265 = sand.u32 %s176, 1
        %s266 = scalar_lea.sflag [#allocation4], %s265
        %s267 = sand.u32 %s176, 1
        %s268 = smul.addr %s267, 2
        %s269 = scalar_lea.vmem [#allocation3], %s268
        %p270 = scmp.lt.s32.totalorder %s24, 1
        %s271 = scalar_select %p270, %s24, 1
        %s272 = smul.addr %s271, 54
        %s273 = smul.addr %s272, 4
        %s274 = scalar_lea.vmem %s0, %s273
        %p275 = scmp.lt.s32.totalorder %s24, 1
        %s276 = scalar_select %p275, %s24, 1
        %s277 = smul.addr %s276, 2
        %s278 = scalar_lea.vmem %s5, %s277
        %p280 = scmp.eq.s32.totalorder %s25, 0
        // Predicated region
        $region45: #{tpu_custom_call.1} parent=43 // pred_check
          %p281 = pneg %p280
        $region46: #{tpu_custom_call.1} parent=43 // pred_check_branch
          %283 = sbr.rel (%p281) target = $region48
        $region47: #{tpu_custom_call.1} parent=43 // pred_region
          %284 = vst [vmem:[#allocation2] sm:$0x1] 0.0
        $region48: #{tpu_custom_call.1} parent=43 // pred_fallthru
          _
        %s285 = smul.u32 %s25, 8
        %s286 = smul.u32 %s285, 3
        %s287 = smul.addr %s286, 4
        %s288 = scalar_lea.vmem %s274, %s287
        %v289 = vld [vmem:[%s288] sm:$0xf]
        %v290 = vld [vmem:[%s288 + $0x4] sm:$0xf]
        %v291 = vld [vmem:[%s288 + $0xc] sm:$0xf]
        %v292 = vld [vmem:[%s288 + $0x10] sm:$0xf]
        %v293 = vld [vmem:[%s288 + $0x18] sm:$0xf]
        %v294 = vld [vmem:[%s288 + $0x1c] sm:$0xf]
        %v295 = vld [vmem:[%s288 + $0x24] sm:$0xf]
        %v296 = vld [vmem:[%s288 + $0x28] sm:$0xf]
        %v297 = vld [vmem:[%s288 + $0x30] sm:$0xf]
        %v298 = vld [vmem:[%s288 + $0x34] sm:$0xf]
        %v299 = vld [vmem:[%s288 + $0x3c] sm:$0xf]
        %v300 = vld [vmem:[%s288 + $0x40] sm:$0xf]
        %v301 = vld [vmem:[%s288 + $0x48] sm:$0xf]
        %v302 = vld [vmem:[%s288 + $0x4c] sm:$0xf]
        %v303 = vld [vmem:[%s288 + $0x54] sm:$0xf]
        %v304 = vld [vmem:[%s288 + $0x58] sm:$0xf]
        %v305 = vld [vmem:[%s1] sm:$0x3]
        %v306 = vld [vmem:[%s288 + $0x8] sm:$0x1]
        %v307 = vld [vmem:[%s288 + $0x14] sm:$0x1]
        %v308 = vld [vmem:[%s288 + $0x20] sm:$0x1]
        %v309 = vld [vmem:[%s288 + $0x2c] sm:$0x1]
        %v310 = vld [vmem:[%s288 + $0x38] sm:$0x1]
        %v311 = vld [vmem:[%s288 + $0x44] sm:$0x1]
        %v312 = vld [vmem:[%s288 + $0x50] sm:$0x1]
        %v313 = vld [vmem:[%s288 + $0x5c] sm:$0x1]
        %vm314 = vsmask.f32 3328
        %vm315 = vsmask.f32 7440
        %vm316 = vmor %vm314, %vm315
        %v318 = vshrl.u32 %v289, 16
        %v320 = vrot.slane %v318, 4
        %v321 = vshll.u32 %v289, 16
        %v323 = vrot.slane %v321, 5
        %v324 = vor.u32 %v320, %v323
        %v325 = vrot.slane %v324, 4
        %v327 = vshll.u32 %v290, 16
        %v329 = vrot.slane %v327, 5
        %v330 = vsel %vm316, %v325, %v329
        %v331 = vshrl.u32 %v290, 16
        %v333 = vrot.slane %v331, 4
        %v334 = vor.u32 %v333, %v329
        %v335 = vrot.slane %v334, 4
        %v337 = vshll.u32 %v306, 16
        %v339 = vrot.slane %v337, 5
        %v340 = vsel %vm316, %v335, %v339
        %v342 = vshrl.u32 %v291, 16
        %v344 = vrot.slane %v342, 4
        %v345 = vshll.u32 %v291, 16
        %v347 = vrot.slane %v345, 5
        %v348 = vor.u32 %v344, %v347
        %v349 = vrot.slane %v348, 4
        %v351 = vshll.u32 %v292, 16
        %v353 = vrot.slane %v351, 5
        %v354 = vsel %vm316, %v349, %v353
        %v355 = vshrl.u32 %v292, 16
        %v357 = vrot.slane %v355, 4
        %v358 = vor.u32 %v357, %v353
        %v359 = vrot.slane %v358, 4
        %v361 = vshll.u32 %v307, 16
        %v363 = vrot.slane %v361, 5
        %v364 = vsel %vm316, %v359, %v363
        %v366 = vshrl.u32 %v293, 16
        %v368 = vrot.slane %v366, 4
        %v369 = vshll.u32 %v293, 16
        %v371 = vrot.slane %v369, 5
        %v372 = vor.u32 %v368, %v371
        %v373 = vrot.slane %v372, 4
        %v375 = vshll.u32 %v294, 16
        %v377 = vrot.slane %v375, 5
        %v378 = vsel %vm316, %v373, %v377
        %v379 = vshrl.u32 %v294, 16
        %v381 = vrot.slane %v379, 4
        %v382 = vor.u32 %v381, %v377
        %v383 = vrot.slane %v382, 4
        %v385 = vshll.u32 %v308, 16
        %v387 = vrot.slane %v385, 5
        %v388 = vsel %vm316, %v383, %v387
        %v390 = vshrl.u32 %v295, 16
        %v392 = vrot.slane %v390, 4
        %v393 = vshll.u32 %v295, 16
        %v395 = vrot.slane %v393, 5
        %v396 = vor.u32 %v392, %v395
        %v397 = vrot.slane %v396, 4
        %v399 = vshll.u32 %v296, 16
        %v401 = vrot.slane %v399, 5
        %v402 = vsel %vm316, %v397, %v401
        %v403 = vshrl.u32 %v296, 16
        %v405 = vrot.slane %v403, 4
        %v406 = vor.u32 %v405, %v401
        %v407 = vrot.slane %v406, 4
        %v409 = vshll.u32 %v309, 16
        %v411 = vrot.slane %v409, 5
        %v412 = vsel %vm316, %v407, %v411
        %v414 = vshrl.u32 %v297, 16
        %v416 = vrot.slane %v414, 4
        %v417 = vshll.u32 %v297, 16
        %v419 = vrot.slane %v417, 5
        %v420 = vor.u32 %v416, %v419
        %v421 = vrot.slane %v420, 4
        %v423 = vshll.u32 %v298, 16
        %v425 = vrot.slane %v423, 5
        %v426 = vsel %vm316, %v421, %v425
        %v427 = vshrl.u32 %v298, 16
        %v429 = vrot.slane %v427, 4
        %v430 = vor.u32 %v429, %v425
        %v431 = vrot.slane %v430, 4
        %v433 = vshll.u32 %v310, 16
        %v435 = vrot.slane %v433, 5
        %v436 = vsel %vm316, %v431, %v435
        %v438 = vshrl.u32 %v299, 16
        %v440 = vrot.slane %v438, 4
        %v441 = vshll.u32 %v299, 16
        %v443 = vrot.slane %v441, 5
        %v444 = vor.u32 %v440, %v443
        %v445 = vrot.slane %v444, 4
        %v447 = vshll.u32 %v300, 16
        %v449 = vrot.slane %v447, 5
        %v450 = vsel %vm316, %v445, %v449
        %v451 = vshrl.u32 %v300, 16
        %v453 = vrot.slane %v451, 4
        %v454 = vor.u32 %v453, %v449
        %v455 = vrot.slane %v454, 4
        %v457 = vshll.u32 %v311, 16
        %v459 = vrot.slane %v457, 5
        %v460 = vsel %vm316, %v455, %v459
        %v462 = vshrl.u32 %v301, 16
        %v464 = vrot.slane %v462, 4
        %v465 = vshll.u32 %v301, 16
        %v467 = vrot.slane %v465, 5
        %v468 = vor.u32 %v464, %v467
        %v469 = vrot.slane %v468, 4
        %v471 = vshll.u32 %v302, 16
        %v473 = vrot.slane %v471, 5
        %v474 = vsel %vm316, %v469, %v473
        %v475 = vshrl.u32 %v302, 16
        %v477 = vrot.slane %v475, 4
        %v478 = vor.u32 %v477, %v473
        %v479 = vrot.slane %v478, 4
        %v481 = vshll.u32 %v312, 16
        %v483 = vrot.slane %v481, 5
        %v484 = vsel %vm316, %v479, %v483
        %v486 = vshrl.u32 %v303, 16
        %v488 = vrot.slane %v486, 4
        %v489 = vshll.u32 %v303, 16
        %v491 = vrot.slane %v489, 5
        %v492 = vor.u32 %v488, %v491
        %v493 = vrot.slane %v492, 4
        %v495 = vshll.u32 %v304, 16
        %v497 = vrot.slane %v495, 5
        %v498 = vsel %vm316, %v493, %v497
        %v499 = vshrl.u32 %v304, 16
        %v501 = vrot.slane %v499, 4
        %v502 = vor.u32 %v501, %v497
        %v503 = vrot.slane %v502, 4
        %v505 = vshll.u32 %v313, 16
        %v507 = vrot.slane %v505, 5
        %v508 = vsel %vm316, %v503, %v507
        %s509 = scalar_lea.vmem %s1, 2
        %v510 = vld [vmem:[%s509] sm:$0x3]
        %v511 = vunpack.c.l.b16 %v330
        %v512 = vunpack.c.l.b16 %v340
        %v513 = vunpack.c.l.b16 %v354
        %v514 = vunpack.c.l.b16 %v364
        %v515 = vunpack.c.l.b16 %v378
        %v516 = vunpack.c.l.b16 %v388
        %v517 = vunpack.c.l.b16 %v402
        %v518 = vunpack.c.l.b16 %v412
        %v519 = vunpack.c.l.b16 %v426
        %v520 = vunpack.c.l.b16 %v436
        %v521 = vunpack.c.l.b16 %v450
        %v522 = vunpack.c.l.b16 %v460
        %v523 = vunpack.c.l.b16 %v474
        %v524 = vunpack.c.l.b16 %v484
        %v525 = vunpack.c.l.b16 %v498
        %v526 = vunpack.c.l.b16 %v508
        %v527 = vpack.c.b16 %v512, %v511
        %v528 = vpack.c.b16 %v514, %v513
        %v529 = vpack.c.b16 %v516, %v515
        %v530 = vpack.c.b16 %v518, %v517
        %v531 = vpack.c.b16 %v520, %v519
        %v532 = vpack.c.b16 %v522, %v521
        %v533 = vpack.c.b16 %v524, %v523
        %v534 = vpack.c.b16 %v526, %v525
        %vm535 = vcmask 23552
        %v537 = vsel %vm535, %v527, 0
        %v540 = vsel %vm535, %v528, 0
        %v543 = vsel %vm535, %v529, 0
        %v546 = vsel %vm535, %v530, 0
        %v549 = vsel %vm535, %v531, 0
        %v552 = vsel %vm535, %v532, 0
        %v555 = vsel %vm535, %v533, 0
        %v558 = vsel %vm535, %v534, 0
        %vm560 = vcmask 1040384
        %vm561 = vcmask 1041408
        %v562 = vsel %vm560, 4294967295, 65535
        %v563 = vsel %vm561, %v562, 0
        %v565 = vand.u32 %v510, %v563
        %567 = vmatprep.subr.bf16.mxu0 0
        %568 = vmatpush1.bf16.msra.mxu0 %v565
        %569 = vmatprep.subr.bf16.mxu0 0
        %570 = vmatpush1.bf16.msra.mxu0 0
        %571 = vmatprep.subr.bf16.mxu0 0
        %572 = vmatpush1.bf16.msra.mxu0 0
        %573 = vmatprep.subr.bf16.mxu0 0
        %574 = vmatpush1.bf16.msra.mxu0 0
        %575 = vmatprep.subr.bf16.mxu0 0
        %576 = vmatpush1.bf16.msra.mxu0 0
        %577 = vmatprep.subr.bf16.mxu0 0
        %578 = vmatpush1.bf16.msra.mxu0 0
        %579 = vmatprep.subr.bf16.mxu0 0
        %580 = vmatpush1.bf16.msra.mxu0 0
        %581 = vmatprep.subr.bf16.mxu0 0
        %582 = vmatpush1.bf16.msra.mxu0 0
        %583 = vmatprep.subr.bf16.mxu0 0
        %584 = vmatpush1.bf16.msra.mxu0 0
        %585 = vmatprep.subr.bf16.mxu0 0
        %586 = vmatpush1.bf16.msra.mxu0 0
        %587 = vmatprep.subr.bf16.mxu0 0
        %588 = vmatpush1.bf16.msra.mxu0 0
        %589 = vmatprep.subr.bf16.mxu0 0
        %590 = vmatpush1.bf16.msra.mxu0 0
        %591 = vmatprep.subr.bf16.mxu0 0
        %592 = vmatpush1.bf16.msra.mxu0 0
        %593 = vmatprep.subr.bf16.mxu0 0
        %594 = vmatpush1.bf16.msra.mxu0 0
        %595 = vmatprep.subr.bf16.mxu0 0
        %596 = vmatpush1.bf16.msra.mxu0 0
        %597 = vmatprep.subr.bf16.mxu0 0
        %598 = vmatpush1.bf16.msra.mxu0 0
        %599 = vmatprep.mubr.bf16.mxu0 0
        %600 = vmatmul.mubr.bf16.gmra.mrb[0].mxu0 %v537
        %v601 = vpop.f32.mrb[0].mxu0
        %v602 = vadd.f32 0.0, %v601
        %v603 = vpop.f32.mrb[0].mxu0
        %v604 = vpop.f32.mrb[0].mxu0
        %v605 = vadd.f32 0.0, %v604
        %v606 = vpop.f32.mrb[0].mxu0
        %607 = vmatprep.mubr.bf16.mxu0 0
        %608 = vmatmul.mubr.bf16.gmra.mrb[0].mxu0 %v540
        %v609 = vpop.f32.mrb[0].mxu0
        %v610 = vadd.f32 0.0, %v609
        %v611 = vpop.f32.mrb[0].mxu0
        %v612 = vpop.f32.mrb[0].mxu0
        %v613 = vadd.f32 0.0, %v612
        %v614 = vpop.f32.mrb[0].mxu0
        %615 = vmatprep.mubr.bf16.mxu0 0
        %616 = vmatmul.mubr.bf16.gmra.mrb[0].mxu0 %v543
        %v617 = vpop.f32.mrb[0].mxu0
        %v618 = vadd.f32 0.0, %v617
        %v619 = vpop.f32.mrb[0].mxu0
        %v620 = vpop.f32.mrb[0].mxu0
        %v621 = vadd.f32 0.0, %v620
        %v622 = vpop.f32.mrb[0].mxu0
        %623 = vmatprep.mubr.bf16.mxu0 0
        %624 = vmatmul.mubr.bf16.gmra.mrb[0].mxu0 %v546
        %v625 = vpop.f32.mrb[0].mxu0
        %v626 = vadd.f32 0.0, %v625
        %v627 = vpop.f32.mrb[0].mxu0
        %v628 = vpop.f32.mrb[0].mxu0
        %v629 = vadd.f32 0.0, %v628
        %v630 = vpop.f32.mrb[0].mxu0
        %631 = vmatprep.mubr.bf16.mxu0 0
        %632 = vmatmul.mubr.bf16.gmra.mrb[0].mxu0 %v549
        %v633 = vpop.f32.mrb[0].mxu0
        %v634 = vadd.f32 0.0, %v633
        %v635 = vpop.f32.mrb[0].mxu0
        %v636 = vpop.f32.mrb[0].mxu0
        %v637 = vadd.f32 0.0, %v636
        %v638 = vpop.f32.mrb[0].mxu0
        %639 = vmatprep.mubr.bf16.mxu0 0
        %640 = vmatmul.mubr.bf16.gmra.mrb[0].mxu0 %v552
        %v641 = vpop.f32.mrb[0].mxu0
        %v642 = vadd.f32 0.0, %v641
        %v643 = vpop.f32.mrb[0].mxu0
        %v644 = vpop.f32.mrb[0].mxu0
        %v645 = vadd.f32 0.0, %v644
        %v646 = vpop.f32.mrb[0].mxu0
        %647 = vmatprep.mubr.bf16.mxu0 0
        %648 = vmatmul.mubr.bf16.gmra.mrb[0].mxu0 %v555
        %v649 = vpop.f32.mrb[0].mxu0
        %v650 = vadd.f32 0.0, %v649
        %v651 = vpop.f32.mrb[0].mxu0
        %v652 = vpop.f32.mrb[0].mxu0
        %v653 = vadd.f32 0.0, %v652
        %v654 = vpop.f32.mrb[0].mxu0
        %655 = vmatprep.mubr.bf16.mxu0 0
        %656 = vmatmul.mubr.bf16.gmra.mrb[0].mxu0 %v558
        %v657 = vpop.f32.mrb[0].mxu0
        %v658 = vadd.f32 0.0, %v657
        %v659 = vpop.f32.mrb[0].mxu0
        %v660 = vpop.f32.mrb[0].mxu0
        %v661 = vadd.f32 0.0, %v660
        %v662 = vpop.f32.mrb[0].mxu0
        %663 = vdwg.mxu0
        %v680 = vunpack.c.l.b16 %v289
        %v681 = vunpack.c.l.b16 %v290
        %v682 = vunpack.c.l.b16 %v291
        %v683 = vunpack.c.l.b16 %v292
        %v684 = vunpack.c.l.b16 %v293
        %v685 = vunpack.c.l.b16 %v294
        %v686 = vunpack.c.l.b16 %v295
        %v687 = vunpack.c.l.b16 %v296
        %v688 = vunpack.c.l.b16 %v297
        %v689 = vunpack.c.l.b16 %v298
        %v690 = vunpack.c.l.b16 %v299
        %v691 = vunpack.c.l.b16 %v300
        %v692 = vunpack.c.l.b16 %v301
        %v693 = vunpack.c.l.b16 %v302
        %v694 = vunpack.c.l.b16 %v303
        %v695 = vunpack.c.l.b16 %v304
        %v696 = vpack.c.b16 %v681, %v680
        %v697 = vpack.c.b16 %v683, %v682
        %v698 = vpack.c.b16 %v685, %v684
        %v699 = vpack.c.b16 %v687, %v686
        %v700 = vpack.c.b16 %v689, %v688
        %v701 = vpack.c.b16 %v691, %v690
        %v702 = vpack.c.b16 %v693, %v692
        %v703 = vpack.c.b16 %v695, %v694
        %v705 = vsel %vm535, %v696, 0
        %v708 = vsel %vm535, %v697, 0
        %v711 = vsel %vm535, %v698, 0
        %v714 = vsel %vm535, %v699, 0
        %v717 = vsel %vm535, %v700, 0
        %v720 = vsel %vm535, %v701, 0
        %v723 = vsel %vm535, %v702, 0
        %v726 = vsel %vm535, %v703, 0
        %v729 = vand.u32 %v305, %v563
        %731 = vmatprep.subr.bf16.mxu0 0
        %732 = vmatpush1.bf16.msra.mxu0 %v729
        %733 = vmatprep.subr.bf16.mxu0 0
        %734 = vmatpush1.bf16.msra.mxu0 0
        %735 = vmatprep.subr.bf16.mxu0 0
        %736 = vmatpush1.bf16.msra.mxu0 0
        %737 = vmatprep.subr.bf16.mxu0 0
        %738 = vmatpush1.bf16.msra.mxu0 0
        %739 = vmatprep.subr.bf16.mxu0 0
        %740 = vmatpush1.bf16.msra.mxu0 0
        %741 = vmatprep.subr.bf16.mxu0 0
        %742 = vmatpush1.bf16.msra.mxu0 0
        %743 = vmatprep.subr.bf16.mxu0 0
        %744 = vmatpush1.bf16.msra.mxu0 0
        %745 = vmatprep.subr.bf16.mxu0 0
        %746 = vmatpush1.bf16.msra.mxu0 0
        %747 = vmatprep.subr.bf16.mxu0 0
        %748 = vmatpush1.bf16.msra.mxu0 0
        %749 = vmatprep.subr.bf16.mxu0 0
        %750 = vmatpush1.bf16.msra.mxu0 0
        %751 = vmatprep.subr.bf16.mxu0 0
        %752 = vmatpush1.bf16.msra.mxu0 0
        %753 = vmatprep.subr.bf16.mxu0 0
        %754 = vmatpush1.bf16.msra.mxu0 0
        %755 = vmatprep.subr.bf16.mxu0 0
        %756 = vmatpush1.bf16.msra.mxu0 0
        %757 = vmatprep.subr.bf16.mxu0 0
        %758 = vmatpush1.bf16.msra.mxu0 0
        %759 = vmatprep.subr.bf16.mxu0 0
        %760 = vmatpush1.bf16.msra.mxu0 0
        %761 = vmatprep.subr.bf16.mxu0 0
        %762 = vmatpush1.bf16.msra.mxu0 0
        %763 = vmatprep.mubr.bf16.mxu0 0
        %764 = vmatmul.mubr.bf16.gmra.mrb[0].mxu0 %v705
        %v765 = vpop.f32.mrb[0].mxu0
        %v766 = vadd.f32 %v602, %v765
        %v767 = vpop.f32.mrb[0].mxu0
        %v768 = vpop.f32.mrb[0].mxu0
        %v769 = vadd.f32 %v605, %v768
        %v770 = vpop.f32.mrb[0].mxu0
        %771 = vmatprep.mubr.bf16.mxu0 0
        %772 = vmatmul.mubr.bf16.gmra.mrb[0].mxu0 %v708
        %v773 = vpop.f32.mrb[0].mxu0
        %v774 = vadd.f32 %v610, %v773
        %v775 = vpop.f32.mrb[0].mxu0
        %v776 = vpop.f32.mrb[0].mxu0
        %v777 = vadd.f32 %v613, %v776
        %v778 = vpop.f32.mrb[0].mxu0
        %779 = vmatprep.mubr.bf16.mxu0 0
        %780 = vmatmul.mubr.bf16.gmra.mrb[0].mxu0 %v711
        %v781 = vpop.f32.mrb[0].mxu0
        %v782 = vadd.f32 %v618, %v781
        %v783 = vpop.f32.mrb[0].mxu0
        %v784 = vpop.f32.mrb[0].mxu0
        %v785 = vadd.f32 %v621, %v784
        %v786 = vpop.f32.mrb[0].mxu0
        %787 = vmatprep.mubr.bf16.mxu0 0
        %788 = vmatmul.mubr.bf16.gmra.mrb[0].mxu0 %v714
        %v789 = vpop.f32.mrb[0].mxu0
        %v790 = vadd.f32 %v626, %v789
        %v791 = vpop.f32.mrb[0].mxu0
        %v792 = vpop.f32.mrb[0].mxu0
        %v793 = vadd.f32 %v629, %v792
        %v794 = vpop.f32.mrb[0].mxu0
        %795 = vmatprep.mubr.bf16.mxu0 0
        %796 = vmatmul.mubr.bf16.gmra.mrb[0].mxu0 %v717
        %v797 = vpop.f32.mrb[0].mxu0
        %v798 = vadd.f32 %v634, %v797
        %v799 = vpop.f32.mrb[0].mxu0
        %v800 = vpop.f32.mrb[0].mxu0
        %v801 = vadd.f32 %v637, %v800
        %v802 = vpop.f32.mrb[0].mxu0
        %803 = vmatprep.mubr.bf16.mxu0 0
        %804 = vmatmul.mubr.bf16.gmra.mrb[0].mxu0 %v720
        %v805 = vpop.f32.mrb[0].mxu0
        %v806 = vadd.f32 %v642, %v805
        %v807 = vpop.f32.mrb[0].mxu0
        %v808 = vpop.f32.mrb[0].mxu0
        %v809 = vadd.f32 %v645, %v808
        %v810 = vpop.f32.mrb[0].mxu0
        %811 = vmatprep.mubr.bf16.mxu0 0
        %812 = vmatmul.mubr.bf16.gmra.mrb[0].mxu0 %v723
        %v813 = vpop.f32.mrb[0].mxu0
        %v814 = vadd.f32 %v650, %v813
        %v815 = vpop.f32.mrb[0].mxu0
        %v816 = vpop.f32.mrb[0].mxu0
        %v817 = vadd.f32 %v653, %v816
        %v818 = vpop.f32.mrb[0].mxu0
        %819 = vmatprep.mubr.bf16.mxu0 0
        %820 = vmatmul.mubr.bf16.gmra.mrb[0].mxu0 %v726
        %v821 = vpop.f32.mrb[0].mxu0
        %v822 = vadd.f32 %v658, %v821
        %v823 = vpop.f32.mrb[0].mxu0
        %v824 = vpop.f32.mrb[0].mxu0
        %v825 = vadd.f32 %v661, %v824
        %v826 = vpop.f32.mrb[0].mxu0
        %827 = vdwg.mxu0
        %v828 = vld [vmem:[%s288] sm:$0xe]
        %v829 = vld [vmem:[%s288 + $0xc] sm:$0xe]
        %v830 = vld [vmem:[%s288 + $0x18] sm:$0xe]
        %v831 = vld [vmem:[%s288 + $0x24] sm:$0xe]
        %v832 = vld [vmem:[%s288 + $0x30] sm:$0xe]
        %v833 = vld [vmem:[%s288 + $0x3c] sm:$0xe]
        %v834 = vld [vmem:[%s288 + $0x48] sm:$0xe]
        %v835 = vld [vmem:[%s288 + $0x54] sm:$0xe]
        %vm852 = vcmask 1042432
        %vm853 = vcmask 1046532
        %vm854 = vmor %vm852, %vm853
        %v855 = vrot.slane %v828, 5
        %v856 = vrot.slane %v855, 4
        %v857 = vrot.slane %v290, 5
        %v858 = vsel %vm854, %v856, %v857
        %v859 = vrot.slane %v857, 4
        %v860 = vrot.slane %v306, 5
        %v861 = vsel %vm854, %v859, %v860
        %v862 = vrot.slane %v829, 5
        %v863 = vrot.slane %v862, 4
        %v864 = vrot.slane %v292, 5
        %v865 = vsel %vm854, %v863, %v864
        %v866 = vrot.slane %v864, 4
        %v867 = vrot.slane %v307, 5
        %v868 = vsel %vm854, %v866, %v867
        %v869 = vrot.slane %v830, 5
        %v870 = vrot.slane %v869, 4
        %v871 = vrot.slane %v294, 5
        %v872 = vsel %vm854, %v870, %v871
        %v873 = vrot.slane %v871, 4
        %v874 = vrot.slane %v308, 5
        %v875 = vsel %vm854, %v873, %v874
        %v876 = vrot.slane %v831, 5
        %v877 = vrot.slane %v876, 4
        %v878 = vrot.slane %v296, 5
        %v879 = vsel %vm854, %v877, %v878
        %v880 = vrot.slane %v878, 4
        %v881 = vrot.slane %v309, 5
        %v882 = vsel %vm854, %v880, %v881
        %v883 = vrot.slane %v832, 5
        %v884 = vrot.slane %v883, 4
        %v885 = vrot.slane %v298, 5
        %v886 = vsel %vm854, %v884, %v885
        %v887 = vrot.slane %v885, 4
        %v888 = vrot.slane %v310, 5
        %v889 = vsel %vm854, %v887, %v888
        %v890 = vrot.slane %v833, 5
        %v891 = vrot.slane %v890, 4
        %v892 = vrot.slane %v300, 5
        %v893 = vsel %vm854, %v891, %v892
        %v894 = vrot.slane %v892, 4
        %v895 = vrot.slane %v311, 5
        %v896 = vsel %vm854, %v894, %v895
        %v897 = vrot.slane %v834, 5
        %v898 = vrot.slane %v897, 4
        %v899 = vrot.slane %v302, 5
        %v900 = vsel %vm854, %v898, %v899
        %v901 = vrot.slane %v899, 4
        %v902 = vrot.slane %v312, 5
        %v903 = vsel %vm854, %v901, %v902
        %v904 = vrot.slane %v835, 5
        %v905 = vrot.slane %v904, 4
        %v906 = vrot.slane %v304, 5
        %v907 = vsel %vm854, %v905, %v906
        %v908 = vrot.slane %v906, 4
        %v909 = vrot.slane %v313, 5
        %v910 = vsel %vm854, %v908, %v909
        %s911 = scalar_lea.vmem %s1, 4
        %v912 = vld [vmem:[%s911] sm:$0x3]
        %v913 = vunpack.c.l.b16 %v858
        %v914 = vunpack.c.l.b16 %v861
        %v915 = vunpack.c.l.b16 %v865
        %v916 = vunpack.c.l.b16 %v868
        %v917 = vunpack.c.l.b16 %v872
        %v918 = vunpack.c.l.b16 %v875
        %v919 = vunpack.c.l.b16 %v879
        %v920 = vunpack.c.l.b16 %v882
        %v921 = vunpack.c.l.b16 %v886
        %v922 = vunpack.c.l.b16 %v889
        %v923 = vunpack.c.l.b16 %v893
        %v924 = vunpack.c.l.b16 %v896
        %v925 = vunpack.c.l.b16 %v900
        %v926 = vunpack.c.l.b16 %v903
        %v927 = vunpack.c.l.b16 %v907
        %v928 = vunpack.c.l.b16 %v910
        %v929 = vpack.c.b16 %v914, %v913
        %v930 = vpack.c.b16 %v916, %v915
        %v931 = vpack.c.b16 %v918, %v917
        %v932 = vpack.c.b16 %v920, %v919
        %v933 = vpack.c.b16 %v922, %v921
        %v934 = vpack.c.b16 %v924, %v923
        %v935 = vpack.c.b16 %v926, %v925
        %v936 = vpack.c.b16 %v928, %v927
        %v938 = vsel %vm535, %v929, 0
        %v941 = vsel %vm535, %v930, 0
        %v944 = vsel %vm535, %v931, 0
        %v947 = vsel %vm535, %v932, 0
        %v950 = vsel %vm535, %v933, 0
        %v953 = vsel %vm535, %v934, 0
        %v956 = vsel %vm535, %v935, 0
        %v959 = vsel %vm535, %v936, 0
        %v962 = vand.u32 %v912, %v563
        %964 = vmatprep.subr.bf16.mxu0 0
        %965 = vmatpush1.bf16.msra.mxu0 %v962
        %966 = vmatprep.subr.bf16.mxu0 0
        %967 = vmatpush1.bf16.msra.mxu0 0
        %968 = vmatprep.subr.bf16.mxu0 0
        %969 = vmatpush1.bf16.msra.mxu0 0
        %970 = vmatprep.subr.bf16.mxu0 0
        %971 = vmatpush1.bf16.msra.mxu0 0
        %972 = vmatprep.subr.bf16.mxu0 0
        %973 = vmatpush1.bf16.msra.mxu0 0
        %974 = vmatprep.subr.bf16.mxu0 0
        %975 = vmatpush1.bf16.msra.mxu0 0
        %976 = vmatprep.subr.bf16.mxu0 0
        %977 = vmatpush1.bf16.msra.mxu0 0
        %978 = vmatprep.subr.bf16.mxu0 0
        %979 = vmatpush1.bf16.msra.mxu0 0
        %980 = vmatprep.subr.bf16.mxu0 0
        %981 = vmatpush1.bf16.msra.mxu0 0
        %982 = vmatprep.subr.bf16.mxu0 0
        %983 = vmatpush1.bf16.msra.mxu0 0
        %984 = vmatprep.subr.bf16.mxu0 0
        %985 = vmatpush1.bf16.msra.mxu0 0
        %986 = vmatprep.subr.bf16.mxu0 0
        %987 = vmatpush1.bf16.msra.mxu0 0
        %988 = vmatprep.subr.bf16.mxu0 0
        %989 = vmatpush1.bf16.msra.mxu0 0
        %990 = vmatprep.subr.bf16.mxu0 0
        %991 = vmatpush1.bf16.msra.mxu0 0
        %992 = vmatprep.subr.bf16.mxu0 0
        %993 = vmatpush1.bf16.msra.mxu0 0
        %994 = vmatprep.subr.bf16.mxu0 0
        %995 = vmatpush1.bf16.msra.mxu0 0
        %996 = vmatprep.mubr.bf16.mxu0 0
        %997 = vmatmul.mubr.bf16.gmra.mrb[0].mxu0 %v938
        %v998 = vpop.f32.mrb[0].mxu0
        %v999 = vadd.f32 0.0, %v998
        %v1000 = vpop.f32.mrb[0].mxu0
        %v1001 = vpop.f32.mrb[0].mxu0
        %v1002 = vadd.f32 0.0, %v1001
        %v1003 = vpop.f32.mrb[0].mxu0
        %1004 = vmatprep.mubr.bf16.mxu0 0
        %1005 = vmatmul.mubr.bf16.gmra.mrb[0].mxu0 %v941
        %v1006 = vpop.f32.mrb[0].mxu0
        %v1007 = vadd.f32 0.0, %v1006
        %v1008 = vpop.f32.mrb[0].mxu0
        %v1009 = vpop.f32.mrb[0].mxu0
        %v1010 = vadd.f32 0.0, %v1009
        %v1011 = vpop.f32.mrb[0].mxu0
        %1012 = vmatprep.mubr.bf16.mxu0 0
        %1013 = vmatmul.mubr.bf16.gmra.mrb[0].mxu0 %v944
        %v1014 = vpop.f32.mrb[0].mxu0
        %v1015 = vadd.f32 0.0, %v1014
        %v1016 = vpop.f32.mrb[0].mxu0
        %v1017 = vpop.f32.mrb[0].mxu0
        %v1018 = vadd.f32 0.0, %v1017
        %v1019 = vpop.f32.mrb[0].mxu0
        %1020 = vmatprep.mubr.bf16.mxu0 0
        %1021 = vmatmul.mubr.bf16.gmra.mrb[0].mxu0 %v947
        %v1022 = vpop.f32.mrb[0].mxu0
        %v1023 = vadd.f32 0.0, %v1022
        %v1024 = vpop.f32.mrb[0].mxu0
        %v1025 = vpop.f32.mrb[0].mxu0
        %v1026 = vadd.f32 0.0, %v1025
        %v1027 = vpop.f32.mrb[0].mxu0
        %1028 = vmatprep.mubr.bf16.mxu0 0
        %1029 = vmatmul.mubr.bf16.gmra.mrb[0].mxu0 %v950
        %v1030 = vpop.f32.mrb[0].mxu0
        %v1031 = vadd.f32 0.0, %v1030
        %v1032 = vpop.f32.mrb[0].mxu0
        %v1033 = vpop.f32.mrb[0].mxu0
        %v1034 = vadd.f32 0.0, %v1033
        %v1035 = vpop.f32.mrb[0].mxu0
        %1036 = vmatprep.mubr.bf16.mxu0 0
        %1037 = vmatmul.mubr.bf16.gmra.mrb[0].mxu0 %v953
        %v1038 = vpop.f32.mrb[0].mxu0
        %v1039 = vadd.f32 0.0, %v1038
        %v1040 = vpop.f32.mrb[0].mxu0
        %v1041 = vpop.f32.mrb[0].mxu0
        %v1042 = vadd.f32 0.0, %v1041
        %v1043 = vpop.f32.mrb[0].mxu0
        %1044 = vmatprep.mubr.bf16.mxu0 0
        %1045 = vmatmul.mubr.bf16.gmra.mrb[0].mxu0 %v956
        %v1046 = vpop.f32.mrb[0].mxu0
        %v1047 = vadd.f32 0.0, %v1046
        %v1048 = vpop.f32.mrb[0].mxu0
        %v1049 = vpop.f32.mrb[0].mxu0
        %v1050 = vadd.f32 0.0, %v1049
        %v1051 = vpop.f32.mrb[0].mxu0
        %1052 = vmatprep.mubr.bf16.mxu0 0
        %1053 = vmatmul.mubr.bf16.gmra.mrb[0].mxu0 %v959
        %v1054 = vpop.f32.mrb[0].mxu0
        %v1055 = vadd.f32 0.0, %v1054
        %v1056 = vpop.f32.mrb[0].mxu0
        %v1057 = vpop.f32.mrb[0].mxu0
        %v1058 = vadd.f32 0.0, %v1057
        %v1059 = vpop.f32.mrb[0].mxu0
        %1060 = vdwg.mxu0
        %v1061 = vadd.f32 %v766, %v999
        %v1062 = vadd.f32 %v769, %v1002
        %v1063 = vadd.f32 %v774, %v1007
        %v1064 = vadd.f32 %v777, %v1010
        %v1065 = vadd.f32 %v782, %v1015
        %v1066 = vadd.f32 %v785, %v1018
        %v1067 = vadd.f32 %v790, %v1023
        %v1068 = vadd.f32 %v793, %v1026
        %v1069 = vadd.f32 %v798, %v1031
        %v1070 = vadd.f32 %v801, %v1034
        %v1071 = vadd.f32 %v806, %v1039
        %v1072 = vadd.f32 %v809, %v1042
        %v1073 = vadd.f32 %v814, %v1047
        %v1074 = vadd.f32 %v817, %v1050
        %v1075 = vadd.f32 %v822, %v1055
        %v1076 = vadd.f32 %v825, %v1058
        %s1077 = sadd.s32 %s285, 1
        %s1078 = smul.u32 %s1077, 3
        %s1079 = smul.addr %s1078, 4
        %s1080 = scalar_lea.vmem %s274, %s1079
        %v1081 = vld [vmem:[%s1080] sm:$0xf]
        %v1082 = vld [vmem:[%s1080 + $0x4] sm:$0xf]
        %v1083 = vld [vmem:[%s1080 + $0xc] sm:$0xf]
        %v1084 = vld [vmem:[%s1080 + $0x10] sm:$0xf]
        %v1085 = vld [vmem:[%s1080 + $0x18] sm:$0xf]
        %v1086 = vld [vmem:[%s1080 + $0x1c] sm:$0xf]
        %v1087 = vld [vmem:[%s1080 + $0x24] sm:$0xf]
        %v1088 = vld [vmem:[%s1080 + $0x28] sm:$0xf]
        %v1089 = vld [vmem:[%s1080 + $0x30] sm:$0xf]
        %v1090 = vld [vmem:[%s1080 + $0x34] sm:$0xf]
        %v1091 = vld [vmem:[%s1080 + $0x3c] sm:$0xf]
        %v1092 = vld [vmem:[%s1080 + $0x40] sm:$0xf]
        %v1093 = vld [vmem:[%s1080 + $0x48] sm:$0xf]
        %v1094 = vld [vmem:[%s1080 + $0x4c] sm:$0xf]
        %v1095 = vld [vmem:[%s1080 + $0x54] sm:$0xf]
        %v1096 = vld [vmem:[%s1080 + $0x58] sm:$0xf]
        %s1097 = scalar_lea.vmem %s1, 6
        %v1098 = vld [vmem:[%s1097] sm:$0x3]
        %v1115 = vunpack.c.l.b16 %v1081
        %v1116 = vunpack.c.l.b16 %v1082
        %v1117 = vunpack.c.l.b16 %v1083
        %v1118 = vunpack.c.l.b16 %v1084
        %v1119 = vunpack.c.l.b16 %v1085
        %v1120 = vunpack.c.l.b16 %v1086
        %v1121 = vunpack.c.l.b16 %v1087
        %v1122 = vunpack.c.l.b16 %v1088
        %v1123 = vunpack.c.l.b16 %v1089
        %v1124 = vunpack.c.l.b16 %v1090
        %v1125 = vunpack.c.l.b16 %v1091
        %v1126 = vunpack.c.l.b16 %v1092
        %v1127 = vunpack.c.l.b16 %v1093
        %v1128 = vunpack.c.l.b16 %v1094
        %v1129 = vunpack.c.l.b16 %v1095
        %v1130 = vunpack.c.l.b16 %v1096
        %v1131 = vpack.c.b16 %v1116, %v1115
        %v1132 = vpack.c.b16 %v1118, %v1117
        %v1133 = vpack.c.b16 %v1120, %v1119
        %v1134 = vpack.c.b16 %v1122, %v1121
        %v1135 = vpack.c.b16 %v1124, %v1123
        %v1136 = vpack.c.b16 %v1126, %v1125
        %v1137 = vpack.c.b16 %v1128, %v1127
        %v1138 = vpack.c.b16 %v1130, %v1129
        %v1140 = vsel %vm535, %v1131, 0
        %v1143 = vsel %vm535, %v1132, 0
        %v1146 = vsel %vm535, %v1133, 0
        %v1149 = vsel %vm535, %v1134, 0
        %v1152 = vsel %vm535, %v1135, 0
        %v1155 = vsel %vm535, %v1136, 0
        %v1158 = vsel %vm535, %v1137, 0
        %v1161 = vsel %vm535, %v1138, 0
        %v1164 = vand.u32 %v1098, %v563
        %1166 = vmatprep.subr.bf16.mxu0 0
        %1167 = vmatpush1.bf16.msra.mxu0 %v1164
        %1168 = vmatprep.subr.bf16.mxu0 0
        %1169 = vmatpush1.bf16.msra.mxu0 0
        %1170 = vmatprep.subr.bf16.mxu0 0
        %1171 = vmatpush1.bf16.msra.mxu0 0
        %1172 = vmatprep.subr.bf16.mxu0 0
        %1173 = vmatpush1.bf16.msra.mxu0 0
        %1174 = vmatprep.subr.bf16.mxu0 0
        %1175 = vmatpush1.bf16.msra.mxu0 0
        %1176 = vmatprep.subr.bf16.mxu0 0
        %1177 = vmatpush1.bf16.msra.mxu0 0
        %1178 = vmatprep.subr.bf16.mxu0 0
        %1179 = vmatpush1.bf16.msra.mxu0 0
        %1180 = vmatprep.subr.bf16.mxu0 0
        %1181 = vmatpush1.bf16.msra.mxu0 0
        %1182 = vmatprep.subr.bf16.mxu0 0
        %1183 = vmatpush1.bf16.msra.mxu0 0
        %1184 = vmatprep.subr.bf16.mxu0 0
        %1185 = vmatpush1.bf16.msra.mxu0 0
        %1186 = vmatprep.subr.bf16.mxu0 0
        %1187 = vmatpush1.bf16.msra.mxu0 0
        %1188 = vmatprep.subr.bf16.mxu0 0
        %1189 = vmatpush1.bf16.msra.mxu0 0
        %1190 = vmatprep.subr.bf16.mxu0 0
        %1191 = vmatpush1.bf16.msra.mxu0 0
        %1192 = vmatprep.subr.bf16.mxu0 0
        %1193 = vmatpush1.bf16.msra.mxu0 0
        %1194 = vmatprep.subr.bf16.mxu0 0
        %1195 = vmatpush1.bf16.msra.mxu0 0
        %1196 = vmatprep.subr.bf16.mxu0 0
        %1197 = vmatpush1.bf16.msra.mxu0 0
        %1198 = vmatprep.mubr.bf16.mxu0 0
        %1199 = vmatmul.mubr.bf16.gmra.mrb[0].mxu0 %v1140
        %v1200 = vpop.f32.mrb[0].mxu0
        %v1201 = vadd.f32 0.0, %v1200
        %v1202 = vpop.f32.mrb[0].mxu0
        %v1203 = vpop.f32.mrb[0].mxu0
        %v1204 = vadd.f32 0.0, %v1203
        %v1205 = vpop.f32.mrb[0].mxu0
        %1206 = vmatprep.mubr.bf16.mxu0 0
        %1207 = vmatmul.mubr.bf16.gmra.mrb[0].mxu0 %v1143
        %v1208 = vpop.f32.mrb[0].mxu0
        %v1209 = vadd.f32 0.0, %v1208
        %v1210 = vpop.f32.mrb[0].mxu0
        %v1211 = vpop.f32.mrb[0].mxu0
        %v1212 = vadd.f32 0.0, %v1211
        %v1213 = vpop.f32.mrb[0].mxu0
        %1214 = vmatprep.mubr.bf16.mxu0 0
        %1215 = vmatmul.mubr.bf16.gmra.mrb[0].mxu0 %v1146
        %v1216 = vpop.f32.mrb[0].mxu0
        %v1217 = vadd.f32 0.0, %v1216
        %v1218 = vpop.f32.mrb[0].mxu0
        %v1219 = vpop.f32.mrb[0].mxu0
        %v1220 = vadd.f32 0.0, %v1219
        %v1221 = vpop.f32.mrb[0].mxu0
        %1222 = vmatprep.mubr.bf16.mxu0 0
        %1223 = vmatmul.mubr.bf16.gmra.mrb[0].mxu0 %v1149
        %v1224 = vpop.f32.mrb[0].mxu0
        %v1225 = vadd.f32 0.0, %v1224
        %v1226 = vpop.f32.mrb[0].mxu0
        %v1227 = vpop.f32.mrb[0].mxu0
        %v1228 = vadd.f32 0.0, %v1227
        %v1229 = vpop.f32.mrb[0].mxu0
        %1230 = vmatprep.mubr.bf16.mxu0 0
        %1231 = vmatmul.mubr.bf16.gmra.mrb[0].mxu0 %v1152
        %v1232 = vpop.f32.mrb[0].mxu0
        %v1233 = vadd.f32 0.0, %v1232
        %v1234 = vpop.f32.mrb[0].mxu0
        %v1235 = vpop.f32.mrb[0].mxu0
        %v1236 = vadd.f32 0.0, %v1235
        %v1237 = vpop.f32.mrb[0].mxu0
        %1238 = vmatprep.mubr.bf16.mxu0 0
        %1239 = vmatmul.mubr.bf16.gmra.mrb[0].mxu0 %v1155
        %v1240 = vpop.f32.mrb[0].mxu0
        %v1241 = vadd.f32 0.0, %v1240
        %v1242 = vpop.f32.mrb[0].mxu0
        %v1243 = vpop.f32.mrb[0].mxu0
        %v1244 = vadd.f32 0.0, %v1243
        %v1245 = vpop.f32.mrb[0].mxu0
        %1246 = vmatprep.mubr.bf16.mxu0 0
        %1247 = vmatmul.mubr.bf16.gmra.mrb[0].mxu0 %v1158
        %v1248 = vpop.f32.mrb[0].mxu0
        %v1249 = vadd.f32 0.0, %v1248
        %v1250 = vpop.f32.mrb[0].mxu0
        %v1251 = vpop.f32.mrb[0].mxu0
        %v1252 = vadd.f32 0.0, %v1251
        %v1253 = vpop.f32.mrb[0].mxu0
        %1254 = vmatprep.mubr.bf16.mxu0 0
        %1255 = vmatmul.mubr.bf16.gmra.mrb[0].mxu0 %v1161
        %v1256 = vpop.f32.mrb[0].mxu0
        %v1257 = vadd.f32 0.0, %v1256
        %v1258 = vpop.f32.mrb[0].mxu0
        %v1259 = vpop.f32.mrb[0].mxu0
        %v1260 = vadd.f32 0.0, %v1259
        %v1261 = vpop.f32.mrb[0].mxu0
        %1262 = vdwg.mxu0
        %v1263 = vadd.f32 %v1061, %v1201
        %v1264 = vadd.f32 %v1062, %v1204
        %v1265 = vadd.f32 %v1063, %v1209
        %v1266 = vadd.f32 %v1064, %v1212
        %v1267 = vadd.f32 %v1065, %v1217
        %v1268 = vadd.f32 %v1066, %v1220
        %v1269 = vadd.f32 %v1067, %v1225
        %v1270 = vadd.f32 %v1068, %v1228
        %v1271 = vadd.f32 %v1069, %v1233
        %v1272 = vadd.f32 %v1070, %v1236
        %v1273 = vadd.f32 %v1071, %v1241
        %v1274 = vadd.f32 %v1072, %v1244
        %v1275 = vadd.f32 %v1073, %v1249
        %v1276 = vadd.f32 %v1074, %v1252
        %v1277 = vadd.f32 %v1075, %v1257
        %v1278 = vadd.f32 %v1076, %v1260
        %v1279 = vld [vmem:[%s1080] sm:$0xf]
        %v1280 = vld [vmem:[%s1080 + $0x4] sm:$0xf]
        %v1281 = vld [vmem:[%s1080 + $0x8] sm:$0x1]
        %v1282 = vld [vmem:[%s1080 + $0xc] sm:$0xf]
        %v1283 = vld [vmem:[%s1080 + $0x10] sm:$0xf]
        %v1284 = vld [vmem:[%s1080 + $0x14] sm:$0x1]
        %v1285 = vld [vmem:[%s1080 + $0x18] sm:$0xf]
        %v1286 = vld [vmem:[%s1080 + $0x1c] sm:$0xf]
        %v1287 = vld [vmem:[%s1080 + $0x20] sm:$0x1]
        %v1288 = vld [vmem:[%s1080 + $0x24] sm:$0xf]
        %v1289 = vld [vmem:[%s1080 + $0x28] sm:$0xf]
        %v1290 = vld [vmem:[%s1080 + $0x2c] sm:$0x1]
        %v1291 = vld [vmem:[%s1080 + $0x30] sm:$0xf]
        %v1292 = vld [vmem:[%s1080 + $0x34] sm:$0xf]
        %v1293 = vld [vmem:[%s1080 + $0x38] sm:$0x1]
        %v1294 = vld [vmem:[%s1080 + $0x3c] sm:$0xf]
        %v1295 = vld [vmem:[%s1080 + $0x40] sm:$0xf]
        %v1296 = vld [vmem:[%s1080 + $0x44] sm:$0x1]
        %v1297 = vld [vmem:[%s1080 + $0x48] sm:$0xf]
        %v1298 = vld [vmem:[%s1080 + $0x4c] sm:$0xf]
        %v1299 = vld [vmem:[%s1080 + $0x50] sm:$0x1]
        %v1300 = vld [vmem:[%s1080 + $0x54] sm:$0xf]
        %v1301 = vld [vmem:[%s1080 + $0x58] sm:$0xf]
        %v1302 = vld [vmem:[%s1080 + $0x5c] sm:$0x1]
        %v1304 = vshrl.u32 %v1279, 16
        %v1306 = vrot.slane %v1304, 4
        %v1307 = vshll.u32 %v1279, 16
        %v1309 = vrot.slane %v1307, 5
        %v1310 = vor.u32 %v1306, %v1309
        %v1311 = vrot.slane %v1310, 4
        %v1313 = vshll.u32 %v1280, 16
        %v1315 = vrot.slane %v1313, 5
        %v1316 = vsel %vm316, %v1311, %v1315
        %v1317 = vshrl.u32 %v1280, 16
        %v1319 = vrot.slane %v1317, 4
        %v1320 = vor.u32 %v1319, %v1315
        %v1321 = vrot.slane %v1320, 4
        %v1323 = vshll.u32 %v1281, 16
        %v1325 = vrot.slane %v1323, 5
        %v1326 = vsel %vm316, %v1321, %v1325
        %v1328 = vshrl.u32 %v1282, 16
        %v1330 = vrot.slane %v1328, 4
        %v1331 = vshll.u32 %v1282, 16
        %v1333 = vrot.slane %v1331, 5
        %v1334 = vor.u32 %v1330, %v1333
        %v1335 = vrot.slane %v1334, 4
        %v1337 = vshll.u32 %v1283, 16
        %v1339 = vrot.slane %v1337, 5
        %v1340 = vsel %vm316, %v1335, %v1339
        %v1341 = vshrl.u32 %v1283, 16
        %v1343 = vrot.slane %v1341, 4
        %v1344 = vor.u32 %v1343, %v1339
        %v1345 = vrot.slane %v1344, 4
        %v1347 = vshll.u32 %v1284, 16
        %v1349 = vrot.slane %v1347, 5
        %v1350 = vsel %vm316, %v1345, %v1349
        %v1352 = vshrl.u32 %v1285, 16
        %v1354 = vrot.slane %v1352, 4
        %v1355 = vshll.u32 %v1285, 16
        %v1357 = vrot.slane %v1355, 5
        %v1358 = vor.u32 %v1354, %v1357
        %v1359 = vrot.slane %v1358, 4
        %v1361 = vshll.u32 %v1286, 16
        %v1363 = vrot.slane %v1361, 5
        %v1364 = vsel %vm316, %v1359, %v1363
        %v1365 = vshrl.u32 %v1286, 16
        %v1367 = vrot.slane %v1365, 4
        %v1368 = vor.u32 %v1367, %v1363
        %v1369 = vrot.slane %v1368, 4
        %v1371 = vshll.u32 %v1287, 16
        %v1373 = vrot.slane %v1371, 5
        %v1374 = vsel %vm316, %v1369, %v1373
        %v1376 = vshrl.u32 %v1288, 16
        %v1378 = vrot.slane %v1376, 4
        %v1379 = vshll.u32 %v1288, 16
        %v1381 = vrot.slane %v1379, 5
        %v1382 = vor.u32 %v1378, %v1381
        %v1383 = vrot.slane %v1382, 4
        %v1385 = vshll.u32 %v1289, 16
        %v1387 = vrot.slane %v1385, 5
        %v1388 = vsel %vm316, %v1383, %v1387
        %v1389 = vshrl.u32 %v1289, 16
        %v1391 = vrot.slane %v1389, 4
        %v1392 = vor.u32 %v1391, %v1387
        %v1393 = vrot.slane %v1392, 4
        %v1395 = vshll.u32 %v1290, 16
        %v1397 = vrot.slane %v1395, 5
        %v1398 = vsel %vm316, %v1393, %v1397
        %v1400 = vshrl.u32 %v1291, 16
        %v1402 = vrot.slane %v1400, 4
        %v1403 = vshll.u32 %v1291, 16
        %v1405 = vrot.slane %v1403, 5
        %v1406 = vor.u32 %v1402, %v1405
        %v1407 = vrot.slane %v1406, 4
        %v1409 = vshll.u32 %v1292, 16
        %v1411 = vrot.slane %v1409, 5
        %v1412 = vsel %vm316, %v1407, %v1411
        %v1413 = vshrl.u32 %v1292, 16
        %v1415 = vrot.slane %v1413, 4
        %v1416 = vor.u32 %v1415, %v1411
        %v1417 = vrot.slane %v1416, 4
        %v1419 = vshll.u32 %v1293, 16
        %v1421 = vrot.slane %v1419, 5
        %v1422 = vsel %vm316, %v1417, %v1421
        %v1424 = vshrl.u32 %v1294, 16
        %v1426 = vrot.slane %v1424, 4
        %v1427 = vshll.u32 %v1294, 16
        %v1429 = vrot.slane %v1427, 5
        %v1430 = vor.u32 %v1426, %v1429
        %v1431 = vrot.slane %v1430, 4
        %v1433 = vshll.u32 %v1295, 16
        %v1435 = vrot.slane %v1433, 5
        %v1436 = vsel %vm316, %v1431, %v1435
        %v1437 = vshrl.u32 %v1295, 16
        %v1439 = vrot.slane %v1437, 4
        %v1440 = vor.u32 %v1439, %v1435
        %v1441 = vrot.slane %v1440, 4
        %v1443 = vshll.u32 %v1296, 16
        %v1445 = vrot.slane %v1443, 5
        %v1446 = vsel %vm316, %v1441, %v1445
        %v1448 = vshrl.u32 %v1297, 16
        %v1450 = vrot.slane %v1448, 4
        %v1451 = vshll.u32 %v1297, 16
        %v1453 = vrot.slane %v1451, 5
        %v1454 = vor.u32 %v1450, %v1453
        %v1455 = vrot.slane %v1454, 4
        %v1457 = vshll.u32 %v1298, 16
        %v1459 = vrot.slane %v1457, 5
        %v1460 = vsel %vm316, %v1455, %v1459
        %v1461 = vshrl.u32 %v1298, 16
        %v1463 = vrot.slane %v1461, 4
        %v1464 = vor.u32 %v1463, %v1459
        %v1465 = vrot.slane %v1464, 4
        %v1467 = vshll.u32 %v1299, 16
        %v1469 = vrot.slane %v1467, 5
        %v1470 = vsel %vm316, %v1465, %v1469
        %v1472 = vshrl.u32 %v1300, 16
        %v1474 = vrot.slane %v1472, 4
        %v1475 = vshll.u32 %v1300, 16
        %v1477 = vrot.slane %v1475, 5
        %v1478 = vor.u32 %v1474, %v1477
        %v1479 = vrot.slane %v1478, 4
        %v1481 = vshll.u32 %v1301, 16
        %v1483 = vrot.slane %v1481, 5
        %v1484 = vsel %vm316, %v1479, %v1483
        %v1485 = vshrl.u32 %v1301, 16
        %v1487 = vrot.slane %v1485, 4
        %v1488 = vor.u32 %v1487, %v1483
        %v1489 = vrot.slane %v1488, 4
        %v1491 = vshll.u32 %v1302, 16
        %v1493 = vrot.slane %v1491, 5
        %v1494 = vsel %vm316, %v1489, %v1493
        %s1495 = scalar_lea.vmem %s1, 8
        %v1496 = vld [vmem:[%s1495] sm:$0x3]
        %v1497 = vunpack.c.l.b16 %v1316
        %v1498 = vunpack.c.l.b16 %v1326
        %v1499 = vunpack.c.l.b16 %v1340
        %v1500 = vunpack.c.l.b16 %v1350
        %v1501 = vunpack.c.l.b16 %v1364
        %v1502 = vunpack.c.l.b16 %v1374
        %v1503 = vunpack.c.l.b16 %v1388
        %v1504 = vunpack.c.l.b16 %v1398
        %v1505 = vunpack.c.l.b16 %v1412
        %v1506 = vunpack.c.l.b16 %v1422
        %v1507 = vunpack.c.l.b16 %v1436
        %v1508 = vunpack.c.l.b16 %v1446
        %v1509 = vunpack.c.l.b16 %v1460
        %v1510 = vunpack.c.l.b16 %v1470
        %v1511 = vunpack.c.l.b16 %v1484
        %v1512 = vunpack.c.l.b16 %v1494
        %v1513 = vpack.c.b16 %v1498, %v1497
        %v1514 = vpack.c.b16 %v1500, %v1499
        %v1515 = vpack.c.b16 %v1502, %v1501
        %v1516 = vpack.c.b16 %v1504, %v1503
        %v1517 = vpack.c.b16 %v1506, %v1505
        %v1518 = vpack.c.b16 %v1508, %v1507
        %v1519 = vpack.c.b16 %v1510, %v1509
        %v1520 = vpack.c.b16 %v1512, %v1511
        %v1522 = vsel %vm535, %v1513, 0
        %v1525 = vsel %vm535, %v1514, 0
        %v1528 = vsel %vm535, %v1515, 0
        %v1531 = vsel %vm535, %v1516, 0
        %v1534 = vsel %vm535, %v1517, 0
        %v1537 = vsel %vm535, %v1518, 0
        %v1540 = vsel %vm535, %v1519, 0
        %v1543 = vsel %vm535, %v1520, 0
        %v1546 = vand.u32 %v1496, %v563
        %1548 = vmatprep.subr.bf16.mxu0 0
        %1549 = vmatpush1.bf16.msra.mxu0 %v1546
        %1550 = vmatprep.subr.bf16.mxu0 0
        %1551 = vmatpush1.bf16.msra.mxu0 0
        %1552 = vmatprep.subr.bf16.mxu0 0
        %1553 = vmatpush1.bf16.msra.mxu0 0
        %1554 = vmatprep.subr.bf16.mxu0 0
        %1555 = vmatpush1.bf16.msra.mxu0 0
        %1556 = vmatprep.subr.bf16.mxu0 0
        %1557 = vmatpush1.bf16.msra.mxu0 0
        %1558 = vmatprep.subr.bf16.mxu0 0
        %1559 = vmatpush1.bf16.msra.mxu0 0
        %1560 = vmatprep.subr.bf16.mxu0 0
        %1561 = vmatpush1.bf16.msra.mxu0 0
        %1562 = vmatprep.subr.bf16.mxu0 0
        %1563 = vmatpush1.bf16.msra.mxu0 0
        %1564 = vmatprep.subr.bf16.mxu0 0
        %1565 = vmatpush1.bf16.msra.mxu0 0
        %1566 = vmatprep.subr.bf16.mxu0 0
        %1567 = vmatpush1.bf16.msra.mxu0 0
        %1568 = vmatprep.subr.bf16.mxu0 0
        %1569 = vmatpush1.bf16.msra.mxu0 0
        %1570 = vmatprep.subr.bf16.mxu0 0
        %1571 = vmatpush1.bf16.msra.mxu0 0
        %1572 = vmatprep.subr.bf16.mxu0 0
        %1573 = vmatpush1.bf16.msra.mxu0 0
        %1574 = vmatprep.subr.bf16.mxu0 0
        %1575 = vmatpush1.bf16.msra.mxu0 0
        %1576 = vmatprep.subr.bf16.mxu0 0
        %1577 = vmatpush1.bf16.msra.mxu0 0
        %1578 = vmatprep.subr.bf16.mxu0 0
        %1579 = vmatpush1.bf16.msra.mxu0 0
        %1580 = vmatprep.mubr.bf16.mxu0 0
        %1581 = vmatmul.mubr.bf16.gmra.mrb[0].mxu0 %v1522
        %v1582 = vpop.f32.mrb[0].mxu0
        %v1583 = vadd.f32 0.0, %v1582
        %v1584 = vpop.f32.mrb[0].mxu0
        %v1585 = vpop.f32.mrb[0].mxu0
        %v1586 = vadd.f32 0.0, %v1585
        %v1587 = vpop.f32.mrb[0].mxu0
        %1588 = vmatprep.mubr.bf16.mxu0 0
        %1589 = vmatmul.mubr.bf16.gmra.mrb[0].mxu0 %v1525
        %v1590 = vpop.f32.mrb[0].mxu0
        %v1591 = vadd.f32 0.0, %v1590
        %v1592 = vpop.f32.mrb[0].mxu0
        %v1593 = vpop.f32.mrb[0].mxu0
        %v1594 = vadd.f32 0.0, %v1593
        %v1595 = vpop.f32.mrb[0].mxu0
        %1596 = vmatprep.mubr.bf16.mxu0 0
        %1597 = vmatmul.mubr.bf16.gmra.mrb[0].mxu0 %v1528
        %v1598 = vpop.f32.mrb[0].mxu0
        %v1599 = vadd.f32 0.0, %v1598
        %v1600 = vpop.f32.mrb[0].mxu0
        %v1601 = vpop.f32.mrb[0].mxu0
        %v1602 = vadd.f32 0.0, %v1601
        %v1603 = vpop.f32.mrb[0].mxu0
        %1604 = vmatprep.mubr.bf16.mxu0 0
        %1605 = vmatmul.mubr.bf16.gmra.mrb[0].mxu0 %v1531
        %v1606 = vpop.f32.mrb[0].mxu0
        %v1607 = vadd.f32 0.0, %v1606
        %v1608 = vpop.f32.mrb[0].mxu0
        %v1609 = vpop.f32.mrb[0].mxu0
        %v1610 = vadd.f32 0.0, %v1609
        %v1611 = vpop.f32.mrb[0].mxu0
        %1612 = vmatprep.mubr.bf16.mxu0 0
        %1613 = vmatmul.mubr.bf16.gmra.mrb[0].mxu0 %v1534
        %v1614 = vpop.f32.mrb[0].mxu0
        %v1615 = vadd.f32 0.0, %v1614
        %v1616 = vpop.f32.mrb[0].mxu0
        %v1617 = vpop.f32.mrb[0].mxu0
        %v1618 = vadd.f32 0.0, %v1617
        %v1619 = vpop.f32.mrb[0].mxu0
        %1620 = vmatprep.mubr.bf16.mxu0 0
        %1621 = vmatmul.mubr.bf16.gmra.mrb[0].mxu0 %v1537
        %v1622 = vpop.f32.mrb[0].mxu0
        %v1623 = vadd.f32 0.0, %v1622
        %v1624 = vpop.f32.mrb[0].mxu0
        %v1625 = vpop.f32.mrb[0].mxu0
        %v1626 = vadd.f32 0.0, %v1625
        %v1627 = vpop.f32.mrb[0].mxu0
        %1628 = vmatprep.mubr.bf16.mxu0 0
        %1629 = vmatmul.mubr.bf16.gmra.mrb[0].mxu0 %v1540
        %v1630 = vpop.f32.mrb[0].mxu0
        %v1631 = vadd.f32 0.0, %v1630
        %v1632 = vpop.f32.mrb[0].mxu0
        %v1633 = vpop.f32.mrb[0].mxu0
        %v1634 = vadd.f32 0.0, %v1633
        %v1635 = vpop.f32.mrb[0].mxu0
        %1636 = vmatprep.mubr.bf16.mxu0 0
        %1637 = vmatmul.mubr.bf16.gmra.mrb[0].mxu0 %v1543
        %v1638 = vpop.f32.mrb[0].mxu0
        %v1639 = vadd.f32 0.0, %v1638
        %v1640 = vpop.f32.mrb[0].mxu0
        %v1641 = vpop.f32.mrb[0].mxu0
        %v1642 = vadd.f32 0.0, %v1641
        %v1643 = vpop.f32.mrb[0].mxu0
        %1644 = vdwg.mxu0
        %v1645 = vadd.f32 %v1263, %v1583
        %v1646 = vadd.f32 %v1264, %v1586
        %v1647 = vadd.f32 %v1265, %v1591
        %v1648 = vadd.f32 %v1266, %v1594
        %v1649 = vadd.f32 %v1267, %v1599
        %v1650 = vadd.f32 %v1268, %v1602
        %v1651 = vadd.f32 %v1269, %v1607
        %v1652 = vadd.f32 %v1270, %v1610
        %v1653 = vadd.f32 %v1271, %v1615
        %v1654 = vadd.f32 %v1272, %v1618
        %v1655 = vadd.f32 %v1273, %v1623
        %v1656 = vadd.f32 %v1274, %v1626
        %v1657 = vadd.f32 %v1275, %v1631
        %v1658 = vadd.f32 %v1276, %v1634
        %v1659 = vadd.f32 %v1277, %v1639
        %v1660 = vadd.f32 %v1278, %v1642
        %v1661 = vld [vmem:[%s1080] sm:$0xe]
        %v1662 = vld [vmem:[%s1080 + $0xc] sm:$0xe]
        %v1663 = vld [vmem:[%s1080 + $0x18] sm:$0xe]
        %v1664 = vld [vmem:[%s1080 + $0x24] sm:$0xe]
        %v1665 = vld [vmem:[%s1080 + $0x30] sm:$0xe]
        %v1666 = vld [vmem:[%s1080 + $0x3c] sm:$0xe]
        %v1667 = vld [vmem:[%s1080 + $0x48] sm:$0xe]
        %v1668 = vld [vmem:[%s1080 + $0x54] sm:$0xe]
        %v1693 = vrot.slane %v1661, 5
        %v1694 = vrot.slane %v1693, 4
        %v1695 = vrot.slane %v1280, 5
        %v1696 = vsel %vm854, %v1694, %v1695
        %v1697 = vrot.slane %v1695, 4
        %v1698 = vrot.slane %v1281, 5
        %v1699 = vsel %vm854, %v1697, %v1698
        %v1700 = vrot.slane %v1662, 5
        %v1701 = vrot.slane %v1700, 4
        %v1702 = vrot.slane %v1283, 5
        %v1703 = vsel %vm854, %v1701, %v1702
        %v1704 = vrot.slane %v1702, 4
        %v1705 = vrot.slane %v1284, 5
        %v1706 = vsel %vm854, %v1704, %v1705
        %v1707 = vrot.slane %v1663, 5
        %v1708 = vrot.slane %v1707, 4
        %v1709 = vrot.slane %v1286, 5
        %v1710 = vsel %vm854, %v1708, %v1709
        %v1711 = vrot.slane %v1709, 4
        %v1712 = vrot.slane %v1287, 5
        %v1713 = vsel %vm854, %v1711, %v1712
        %v1714 = vrot.slane %v1664, 5
        %v1715 = vrot.slane %v1714, 4
        %v1716 = vrot.slane %v1289, 5
        %v1717 = vsel %vm854, %v1715, %v1716
        %v1718 = vrot.slane %v1716, 4
        %v1719 = vrot.slane %v1290, 5
        %v1720 = vsel %vm854, %v1718, %v1719
        %v1721 = vrot.slane %v1665, 5
        %v1722 = vrot.slane %v1721, 4
        %v1723 = vrot.slane %v1292, 5
        %v1724 = vsel %vm854, %v1722, %v1723
        %v1725 = vrot.slane %v1723, 4
        %v1726 = vrot.slane %v1293, 5
        %v1727 = vsel %vm854, %v1725, %v1726
        %v1728 = vrot.slane %v1666, 5
        %v1729 = vrot.slane %v1728, 4
        %v1730 = vrot.slane %v1295, 5
        %v1731 = vsel %vm854, %v1729, %v1730
        %v1732 = vrot.slane %v1730, 4
        %v1733 = vrot.slane %v1296, 5
        %v1734 = vsel %vm854, %v1732, %v1733
        %v1735 = vrot.slane %v1667, 5
        %v1736 = vrot.slane %v1735, 4
        %v1737 = vrot.slane %v1298, 5
        %v1738 = vsel %vm854, %v1736, %v1737
        %v1739 = vrot.slane %v1737, 4
        %v1740 = vrot.slane %v1299, 5
        %v1741 = vsel %vm854, %v1739, %v1740
        %v1742 = vrot.slane %v1668, 5
        %v1743 = vrot.slane %v1742, 4
        %v1744 = vrot.slane %v1301, 5
        %v1745 = vsel %vm854, %v1743, %v1744
        %v1746 = vrot.slane %v1744, 4
        %v1747 = vrot.slane %v1302, 5
        %v1748 = vsel %vm854, %v1746, %v1747
        %s1749 = scalar_lea.vmem %s1, 10
        %v1750 = vld [vmem:[%s1749] sm:$0x3]
        %v1751 = vunpack.c.l.b16 %v1696
        %v1752 = vunpack.c.l.b16 %v1699
        %v1753 = vunpack.c.l.b16 %v1703
        %v1754 = vunpack.c.l.b16 %v1706
        %v1755 = vunpack.c.l.b16 %v1710
        %v1756 = vunpack.c.l.b16 %v1713
        %v1757 = vunpack.c.l.b16 %v1717
        %v1758 = vunpack.c.l.b16 %v1720
        %v1759 = vunpack.c.l.b16 %v1724
        %v1760 = vunpack.c.l.b16 %v1727
        %v1761 = vunpack.c.l.b16 %v1731
        %v1762 = vunpack.c.l.b16 %v1734
        %v1763 = vunpack.c.l.b16 %v1738
        %v1764 = vunpack.c.l.b16 %v1741
        %v1765 = vunpack.c.l.b16 %v1745
        %v1766 = vunpack.c.l.b16 %v1748
        %v1767 = vpack.c.b16 %v1752, %v1751
        %v1768 = vpack.c.b16 %v1754, %v1753
        %v1769 = vpack.c.b16 %v1756, %v1755
        %v1770 = vpack.c.b16 %v1758, %v1757
        %v1771 = vpack.c.b16 %v1760, %v1759
        %v1772 = vpack.c.b16 %v1762, %v1761
        %v1773 = vpack.c.b16 %v1764, %v1763
        %v1774 = vpack.c.b16 %v1766, %v1765
        %v1776 = vsel %vm535, %v1767, 0
        %v1779 = vsel %vm535, %v1768, 0
        %v1782 = vsel %vm535, %v1769, 0
        %v1785 = vsel %vm535, %v1770, 0
        %v1788 = vsel %vm535, %v1771, 0
        %v1791 = vsel %vm535, %v1772, 0
        %v1794 = vsel %vm535, %v1773, 0
        %v1797 = vsel %vm535, %v1774, 0
        %v1800 = vand.u32 %v1750, %v563
        %1802 = vmatprep.subr.bf16.mxu0 0
        %1803 = vmatpush1.bf16.msra.mxu0 %v1800
        %1804 = vmatprep.subr.bf16.mxu0 0
        %1805 = vmatpush1.bf16.msra.mxu0 0
        %1806 = vmatprep.subr.bf16.mxu0 0
        %1807 = vmatpush1.bf16.msra.mxu0 0
        %1808 = vmatprep.subr.bf16.mxu0 0
        %1809 = vmatpush1.bf16.msra.mxu0 0
        %1810 = vmatprep.subr.bf16.mxu0 0
        %1811 = vmatpush1.bf16.msra.mxu0 0
        %1812 = vmatprep.subr.bf16.mxu0 0
        %1813 = vmatpush1.bf16.msra.mxu0 0
        %1814 = vmatprep.subr.bf16.mxu0 0
        %1815 = vmatpush1.bf16.msra.mxu0 0
        %1816 = vmatprep.subr.bf16.mxu0 0
        %1817 = vmatpush1.bf16.msra.mxu0 0
        %1818 = vmatprep.subr.bf16.mxu0 0
        %1819 = vmatpush1.bf16.msra.mxu0 0
        %1820 = vmatprep.subr.bf16.mxu0 0
        %1821 = vmatpush1.bf16.msra.mxu0 0
        %1822 = vmatprep.subr.bf16.mxu0 0
        %1823 = vmatpush1.bf16.msra.mxu0 0
        %1824 = vmatprep.subr.bf16.mxu0 0
        %1825 = vmatpush1.bf16.msra.mxu0 0
        %1826 = vmatprep.subr.bf16.mxu0 0
        %1827 = vmatpush1.bf16.msra.mxu0 0
        %1828 = vmatprep.subr.bf16.mxu0 0
        %1829 = vmatpush1.bf16.msra.mxu0 0
        %1830 = vmatprep.subr.bf16.mxu0 0
        %1831 = vmatpush1.bf16.msra.mxu0 0
        %1832 = vmatprep.subr.bf16.mxu0 0
        %1833 = vmatpush1.bf16.msra.mxu0 0
        %1834 = vmatprep.mubr.bf16.mxu0 0
        %1835 = vmatmul.mubr.bf16.gmra.mrb[0].mxu0 %v1776
        %v1836 = vpop.f32.mrb[0].mxu0
        %v1837 = vadd.f32 0.0, %v1836
        %v1838 = vpop.f32.mrb[0].mxu0
        %v1839 = vpop.f32.mrb[0].mxu0
        %v1840 = vadd.f32 0.0, %v1839
        %v1841 = vpop.f32.mrb[0].mxu0
        %1842 = vmatprep.mubr.bf16.mxu0 0
        %1843 = vmatmul.mubr.bf16.gmra.mrb[0].mxu0 %v1779
        %v1844 = vpop.f32.mrb[0].mxu0
        %v1845 = vadd.f32 0.0, %v1844
        %v1846 = vpop.f32.mrb[0].mxu0
        %v1847 = vpop.f32.mrb[0].mxu0
        %v1848 = vadd.f32 0.0, %v1847
        %v1849 = vpop.f32.mrb[0].mxu0
        %1850 = vmatprep.mubr.bf16.mxu0 0
        %1851 = vmatmul.mubr.bf16.gmra.mrb[0].mxu0 %v1782
        %v1852 = vpop.f32.mrb[0].mxu0
        %v1853 = vadd.f32 0.0, %v1852
        %v1854 = vpop.f32.mrb[0].mxu0
        %v1855 = vpop.f32.mrb[0].mxu0
        %v1856 = vadd.f32 0.0, %v1855
        %v1857 = vpop.f32.mrb[0].mxu0
        %1858 = vmatprep.mubr.bf16.mxu0 0
        %1859 = vmatmul.mubr.bf16.gmra.mrb[0].mxu0 %v1785
        %v1860 = vpop.f32.mrb[0].mxu0
        %v1861 = vadd.f32 0.0, %v1860
        %v1862 = vpop.f32.mrb[0].mxu0
        %v1863 = vpop.f32.mrb[0].mxu0
        %v1864 = vadd.f32 0.0, %v1863
        %v1865 = vpop.f32.mrb[0].mxu0
        %1866 = vmatprep.mubr.bf16.mxu0 0
        %1867 = vmatmul.mubr.bf16.gmra.mrb[0].mxu0 %v1788
        %v1868 = vpop.f32.mrb[0].mxu0
        %v1869 = vadd.f32 0.0, %v1868
        %v1870 = vpop.f32.mrb[0].mxu0
        %v1871 = vpop.f32.mrb[0].mxu0
        %v1872 = vadd.f32 0.0, %v1871
        %v1873 = vpop.f32.mrb[0].mxu0
        %1874 = vmatprep.mubr.bf16.mxu0 0
        %1875 = vmatmul.mubr.bf16.gmra.mrb[0].mxu0 %v1791
        %v1876 = vpop.f32.mrb[0].mxu0
        %v1877 = vadd.f32 0.0, %v1876
        %v1878 = vpop.f32.mrb[0].mxu0
        %v1879 = vpop.f32.mrb[0].mxu0
        %v1880 = vadd.f32 0.0, %v1879
        %v1881 = vpop.f32.mrb[0].mxu0
        %1882 = vmatprep.mubr.bf16.mxu0 0
        %1883 = vmatmul.mubr.bf16.gmra.mrb[0].mxu0 %v1794
        %v1884 = vpop.f32.mrb[0].mxu0
        %v1885 = vadd.f32 0.0, %v1884
        %v1886 = vpop.f32.mrb[0].mxu0
        %v1887 = vpop.f32.mrb[0].mxu0
        %v1888 = vadd.f32 0.0, %v1887
        %v1889 = vpop.f32.mrb[0].mxu0
        %1890 = vmatprep.mubr.bf16.mxu0 0
        %1891 = vmatmul.mubr.bf16.gmra.mrb[0].mxu0 %v1797
        %v1892 = vpop.f32.mrb[0].mxu0
        %v1893 = vadd.f32 0.0, %v1892
        %v1894 = vpop.f32.mrb[0].mxu0
        %v1895 = vpop.f32.mrb[0].mxu0
        %v1896 = vadd.f32 0.0, %v1895
        %v1897 = vpop.f32.mrb[0].mxu0
        %1898 = vdwg.mxu0
        %v1899 = vadd.f32 %v1645, %v1837
        %v1900 = vadd.f32 %v1646, %v1840
        %v1901 = vadd.f32 %v1647, %v1845
        %v1902 = vadd.f32 %v1648, %v1848
        %v1903 = vadd.f32 %v1649, %v1853
        %v1904 = vadd.f32 %v1650, %v1856
        %v1905 = vadd.f32 %v1651, %v1861
        %v1906 = vadd.f32 %v1652, %v1864
        %v1907 = vadd.f32 %v1653, %v1869
        %v1908 = vadd.f32 %v1654, %v1872
        %v1909 = vadd.f32 %v1655, %v1877
        %v1910 = vadd.f32 %v1656, %v1880
        %v1911 = vadd.f32 %v1657, %v1885
        %v1912 = vadd.f32 %v1658, %v1888
        %v1913 = vadd.f32 %v1659, %v1893
        %v1914 = vadd.f32 %v1660, %v1896
        %s1915 = sadd.s32 %s285, 2
        %s1916 = smul.u32 %s1915, 3
        %s1917 = smul.addr %s1916, 4
        %s1918 = scalar_lea.vmem %s274, %s1917
        %v1919 = vld [vmem:[%s1918] sm:$0xf]
        %v1920 = vld [vmem:[%s1918 + $0x4] sm:$0xf]
        %v1921 = vld [vmem:[%s1918 + $0xc] sm:$0xf]
        %v1922 = vld [vmem:[%s1918 + $0x10] sm:$0xf]
        %v1923 = vld [vmem:[%s1918 + $0x18] sm:$0xf]
        %v1924 = vld [vmem:[%s1918 + $0x1c] sm:$0xf]
        %v1925 = vld [vmem:[%s1918 + $0x24] sm:$0xf]
        %v1926 = vld [vmem:[%s1918 + $0x28] sm:$0xf]
        %v1927 = vld [vmem:[%s1918 + $0x30] sm:$0xf]
        %v1928 = vld [vmem:[%s1918 + $0x34] sm:$0xf]
        %v1929 = vld [vmem:[%s1918 + $0x3c] sm:$0xf]
        %v1930 = vld [vmem:[%s1918 + $0x40] sm:$0xf]
        %v1931 = vld [vmem:[%s1918 + $0x48] sm:$0xf]
        %v1932 = vld [vmem:[%s1918 + $0x4c] sm:$0xf]
        %v1933 = vld [vmem:[%s1918 + $0x54] sm:$0xf]
        %v1934 = vld [vmem:[%s1918 + $0x58] sm:$0xf]
        %s1935 = scalar_lea.vmem %s1, 12
        %v1936 = vld [vmem:[%s1935] sm:$0x3]
        %v1953 = vunpack.c.l.b16 %v1919
        %v1954 = vunpack.c.l.b16 %v1920
        %v1955 = vunpack.c.l.b16 %v1921
        %v1956 = vunpack.c.l.b16 %v1922
        %v1957 = vunpack.c.l.b16 %v1923
        %v1958 = vunpack.c.l.b16 %v1924
        %v1959 = vunpack.c.l.b16 %v1925
        %v1960 = vunpack.c.l.b16 %v1926
        %v1961 = vunpack.c.l.b16 %v1927
        %v1962 = vunpack.c.l.b16 %v1928
        %v1963 = vunpack.c.l.b16 %v1929
        %v1964 = vunpack.c.l.b16 %v1930
        %v1965 = vunpack.c.l.b16 %v1931
        %v1966 = vunpack.c.l.b16 %v1932
        %v1967 = vunpack.c.l.b16 %v1933
        %v1968 = vunpack.c.l.b16 %v1934
        %v1969 = vpack.c.b16 %v1954, %v1953
        %v1970 = vpack.c.b16 %v1956, %v1955
        %v1971 = vpack.c.b16 %v1958, %v1957
        %v1972 = vpack.c.b16 %v1960, %v1959
        %v1973 = vpack.c.b16 %v1962, %v1961
        %v1974 = vpack.c.b16 %v1964, %v1963
        %v1975 = vpack.c.b16 %v1966, %v1965
        %v1976 = vpack.c.b16 %v1968, %v1967
        %v1978 = vsel %vm535, %v1969, 0
        %v1981 = vsel %vm535, %v1970, 0
        %v1984 = vsel %vm535, %v1971, 0
        %v1987 = vsel %vm535, %v1972, 0
        %v1990 = vsel %vm535, %v1973, 0
        %v1993 = vsel %vm535, %v1974, 0
        %v1996 = vsel %vm535, %v1975, 0
        %v1999 = vsel %vm535, %v1976, 0
        %v2002 = vand.u32 %v1936, %v563
        %2004 = vmatprep.subr.bf16.mxu0 0
        %2005 = vmatpush1.bf16.msra.mxu0 %v2002
        %2006 = vmatprep.subr.bf16.mxu0 0
        %2007 = vmatpush1.bf16.msra.mxu0 0
        %2008 = vmatprep.subr.bf16.mxu0 0
        %2009 = vmatpush1.bf16.msra.mxu0 0
        %2010 = vmatprep.subr.bf16.mxu0 0
        %2011 = vmatpush1.bf16.msra.mxu0 0
        %2012 = vmatprep.subr.bf16.mxu0 0
        %2013 = vmatpush1.bf16.msra.mxu0 0
        %2014 = vmatprep.subr.bf16.mxu0 0
        %2015 = vmatpush1.bf16.msra.mxu0 0
        %2016 = vmatprep.subr.bf16.mxu0 0
        %2017 = vmatpush1.bf16.msra.mxu0 0
        %2018 = vmatprep.subr.bf16.mxu0 0
        %2019 = vmatpush1.bf16.msra.mxu0 0
        %2020 = vmatprep.subr.bf16.mxu0 0
        %2021 = vmatpush1.bf16.msra.mxu0 0
        %2022 = vmatprep.subr.bf16.mxu0 0
        %2023 = vmatpush1.bf16.msra.mxu0 0
        %2024 = vmatprep.subr.bf16.mxu0 0
        %2025 = vmatpush1.bf16.msra.mxu0 0
        %2026 = vmatprep.subr.bf16.mxu0 0
        %2027 = vmatpush1.bf16.msra.mxu0 0
        %2028 = vmatprep.subr.bf16.mxu0 0
        %2029 = vmatpush1.bf16.msra.mxu0 0
        %2030 = vmatprep.subr.bf16.mxu0 0
        %2031 = vmatpush1.bf16.msra.mxu0 0
        %2032 = vmatprep.subr.bf16.mxu0 0
        %2033 = vmatpush1.bf16.msra.mxu0 0
        %2034 = vmatprep.subr.bf16.mxu0 0
        %2035 = vmatpush1.bf16.msra.mxu0 0
        %2036 = vmatprep.mubr.bf16.mxu0 0
        %2037 = vmatmul.mubr.bf16.gmra.mrb[0].mxu0 %v1978
        %v2038 = vpop.f32.mrb[0].mxu0
        %v2039 = vadd.f32 0.0, %v2038
        %v2040 = vpop.f32.mrb[0].mxu0
        %v2041 = vpop.f32.mrb[0].mxu0
        %v2042 = vadd.f32 0.0, %v2041
        %v2043 = vpop.f32.mrb[0].mxu0
        %2044 = vmatprep.mubr.bf16.mxu0 0
        %2045 = vmatmul.mubr.bf16.gmra.mrb[0].mxu0 %v1981
        %v2046 = vpop.f32.mrb[0].mxu0
        %v2047 = vadd.f32 0.0, %v2046
        %v2048 = vpop.f32.mrb[0].mxu0
        %v2049 = vpop.f32.mrb[0].mxu0
        %v2050 = vadd.f32 0.0, %v2049
        %v2051 = vpop.f32.mrb[0].mxu0
        %2052 = vmatprep.mubr.bf16.mxu0 0
        %2053 = vmatmul.mubr.bf16.gmra.mrb[0].mxu0 %v1984
        %v2054 = vpop.f32.mrb[0].mxu0
        %v2055 = vadd.f32 0.0, %v2054
        %v2056 = vpop.f32.mrb[0].mxu0
        %v2057 = vpop.f32.mrb[0].mxu0
        %v2058 = vadd.f32 0.0, %v2057
        %v2059 = vpop.f32.mrb[0].mxu0
        %2060 = vmatprep.mubr.bf16.mxu0 0
        %2061 = vmatmul.mubr.bf16.gmra.mrb[0].mxu0 %v1987
        %v2062 = vpop.f32.mrb[0].mxu0
        %v2063 = vadd.f32 0.0, %v2062
        %v2064 = vpop.f32.mrb[0].mxu0
        %v2065 = vpop.f32.mrb[0].mxu0
        %v2066 = vadd.f32 0.0, %v2065
        %v2067 = vpop.f32.mrb[0].mxu0
        %2068 = vmatprep.mubr.bf16.mxu0 0
        %2069 = vmatmul.mubr.bf16.gmra.mrb[0].mxu0 %v1990
        %v2070 = vpop.f32.mrb[0].mxu0
        %v2071 = vadd.f32 0.0, %v2070
        %v2072 = vpop.f32.mrb[0].mxu0
        %v2073 = vpop.f32.mrb[0].mxu0
        %v2074 = vadd.f32 0.0, %v2073
        %v2075 = vpop.f32.mrb[0].mxu0
        %2076 = vmatprep.mubr.bf16.mxu0 0
        %2077 = vmatmul.mubr.bf16.gmra.mrb[0].mxu0 %v1993
        %v2078 = vpop.f32.mrb[0].mxu0
        %v2079 = vadd.f32 0.0, %v2078
        %v2080 = vpop.f32.mrb[0].mxu0
        %v2081 = vpop.f32.mrb[0].mxu0
        %v2082 = vadd.f32 0.0, %v2081
        %v2083 = vpop.f32.mrb[0].mxu0
        %2084 = vmatprep.mubr.bf16.mxu0 0
        %2085 = vmatmul.mubr.bf16.gmra.mrb[0].mxu0 %v1996
        %v2086 = vpop.f32.mrb[0].mxu0
        %v2087 = vadd.f32 0.0, %v2086
        %v2088 = vpop.f32.mrb[0].mxu0
        %v2089 = vpop.f32.mrb[0].mxu0
        %v2090 = vadd.f32 0.0, %v2089
        %v2091 = vpop.f32.mrb[0].mxu0
        %2092 = vmatprep.mubr.bf16.mxu0 0
        %2093 = vmatmul.mubr.bf16.gmra.mrb[0].mxu0 %v1999
        %v2094 = vpop.f32.mrb[0].mxu0
        %v2095 = vadd.f32 0.0, %v2094
        %v2096 = vpop.f32.mrb[0].mxu0
        %v2097 = vpop.f32.mrb[0].mxu0
        %v2098 = vadd.f32 0.0, %v2097
        %v2099 = vpop.f32.mrb[0].mxu0
        %2100 = vdwg.mxu0
        %v2101 = vadd.f32 %v1899, %v2039
        %v2102 = vadd.f32 %v1900, %v2042
        %v2103 = vadd.f32 %v1901, %v2047
        %v2104 = vadd.f32 %v1902, %v2050
        %v2105 = vadd.f32 %v1903, %v2055
        %v2106 = vadd.f32 %v1904, %v2058
        %v2107 = vadd.f32 %v1905, %v2063
        %v2108 = vadd.f32 %v1906, %v2066
        %v2109 = vadd.f32 %v1907, %v2071
        %v2110 = vadd.f32 %v1908, %v2074
        %v2111 = vadd.f32 %v1909, %v2079
        %v2112 = vadd.f32 %v1910, %v2082
        %v2113 = vadd.f32 %v1911, %v2087
        %v2114 = vadd.f32 %v1912, %v2090
        %v2115 = vadd.f32 %v1913, %v2095
        %v2116 = vadd.f32 %v1914, %v2098
        %v2117 = vld [vmem:[%s1918] sm:$0xf]
        %v2118 = vld [vmem:[%s1918 + $0x4] sm:$0xf]
        %v2119 = vld [vmem:[%s1918 + $0x8] sm:$0x1]
        %v2120 = vld [vmem:[%s1918 + $0xc] sm:$0xf]
        %v2121 = vld [vmem:[%s1918 + $0x10] sm:$0xf]
        %v2122 = vld [vmem:[%s1918 + $0x14] sm:$0x1]
        %v2123 = vld [vmem:[%s1918 + $0x18] sm:$0xf]
        %v2124 = vld [vmem:[%s1918 + $0x1c] sm:$0xf]
        %v2125 = vld [vmem:[%s1918 + $0x20] sm:$0x1]
        %v2126 = vld [vmem:[%s1918 + $0x24] sm:$0xf]
        %v2127 = vld [vmem:[%s1918 + $0x28] sm:$0xf]
        %v2128 = vld [vmem:[%s1918 + $0x2c] sm:$0x1]
        %v2129 = vld [vmem:[%s1918 + $0x30] sm:$0xf]
        %v2130 = vld [vmem:[%s1918 + $0x34] sm:$0xf]
        %v2131 = vld [vmem:[%s1918 + $0x38] sm:$0x1]
        %v2132 = vld [vmem:[%s1918 + $0x3c] sm:$0xf]
        %v2133 = vld [vmem:[%s1918 + $0x40] sm:$0xf]
        %v2134 = vld [vmem:[%s1918 + $0x44] sm:$0x1]
        %v2135 = vld [vmem:[%s1918 + $0x48] sm:$0xf]
        %v2136 = vld [vmem:[%s1918 + $0x4c] sm:$0xf]
        %v2137 = vld [vmem:[%s1918 + $0x50] sm:$0x1]
        %v2138 = vld [vmem:[%s1918 + $0x54] sm:$0xf]
        %v2139 = vld [vmem:[%s1918 + $0x58] sm:$0xf]
        %v2140 = vld [vmem:[%s1918 + $0x5c] sm:$0x1]
        %v2142 = vshrl.u32 %v2117, 16
        %v2144 = vrot.slane %v2142, 4
        %v2145 = vshll.u32 %v2117, 16
        %v2147 = vrot.slane %v2145, 5
        %v2148 = vor.u32 %v2144, %v2147
        %v2149 = vrot.slane %v2148, 4
        %v2151 = vshll.u32 %v2118, 16
        %v2153 = vrot.slane %v2151, 5
        %v2154 = vsel %vm316, %v2149, %v2153
        %v2155 = vshrl.u32 %v2118, 16
        %v2157 = vrot.slane %v2155, 4
        %v2158 = vor.u32 %v2157, %v2153
        %v2159 = vrot.slane %v2158, 4
        %v2161 = vshll.u32 %v2119, 16
        %v2163 = vrot.slane %v2161, 5
        %v2164 = vsel %vm316, %v2159, %v2163
        %v2166 = vshrl.u32 %v2120, 16
        %v2168 = vrot.slane %v2166, 4
        %v2169 = vshll.u32 %v2120, 16
        %v2171 = vrot.slane %v2169, 5
        %v2172 = vor.u32 %v2168, %v2171
        %v2173 = vrot.slane %v2172, 4
        %v2175 = vshll.u32 %v2121, 16
        %v2177 = vrot.slane %v2175, 5
        %v2178 = vsel %vm316, %v2173, %v2177
        %v2179 = vshrl.u32 %v2121, 16
        %v2181 = vrot.slane %v2179, 4
        %v2182 = vor.u32 %v2181, %v2177
        %v2183 = vrot.slane %v2182, 4
        %v2185 = vshll.u32 %v2122, 16
        %v2187 = vrot.slane %v2185, 5
        %v2188 = vsel %vm316, %v2183, %v2187
        %v2190 = vshrl.u32 %v2123, 16
        %v2192 = vrot.slane %v2190, 4
        %v2193 = vshll.u32 %v2123, 16
        %v2195 = vrot.slane %v2193, 5
        %v2196 = vor.u32 %v2192, %v2195
        %v2197 = vrot.slane %v2196, 4
        %v2199 = vshll.u32 %v2124, 16
        %v2201 = vrot.slane %v2199, 5
        %v2202 = vsel %vm316, %v2197, %v2201
        %v2203 = vshrl.u32 %v2124, 16
        %v2205 = vrot.slane %v2203, 4
        %v2206 = vor.u32 %v2205, %v2201
        %v2207 = vrot.slane %v2206, 4
        %v2209 = vshll.u32 %v2125, 16
        %v2211 = vrot.slane %v2209, 5
        %v2212 = vsel %vm316, %v2207, %v2211
        %v2214 = vshrl.u32 %v2126, 16
        %v2216 = vrot.slane %v2214, 4
        %v2217 = vshll.u32 %v2126, 16
        %v2219 = vrot.slane %v2217, 5
        %v2220 = vor.u32 %v2216, %v2219
        %v2221 = vrot.slane %v2220, 4
        %v2223 = vshll.u32 %v2127, 16
        %v2225 = vrot.slane %v2223, 5
        %v2226 = vsel %vm316, %v2221, %v2225
        %v2227 = vshrl.u32 %v2127, 16
        %v2229 = vrot.slane %v2227, 4
        %v2230 = vor.u32 %v2229, %v2225
        %v2231 = vrot.slane %v2230, 4
        %v2233 = vshll.u32 %v2128, 16
        %v2235 = vrot.slane %v2233, 5
        %v2236 = vsel %vm316, %v2231, %v2235
        %v2238 = vshrl.u32 %v2129, 16
        %v2240 = vrot.slane %v2238, 4
        %v2241 = vshll.u32 %v2129, 16
        %v2243 = vrot.slane %v2241, 5
        %v2244 = vor.u32 %v2240, %v2243
        %v2245 = vrot.slane %v2244, 4
        %v2247 = vshll.u32 %v2130, 16
        %v2249 = vrot.slane %v2247, 5
        %v2250 = vsel %vm316, %v2245, %v2249
        %v2251 = vshrl.u32 %v2130, 16
        %v2253 = vrot.slane %v2251, 4
        %v2254 = vor.u32 %v2253, %v2249
        %v2255 = vrot.slane %v2254, 4
        %v2257 = vshll.u32 %v2131, 16
        %v2259 = vrot.slane %v2257, 5
        %v2260 = vsel %vm316, %v2255, %v2259
        %v2262 = vshrl.u32 %v2132, 16
        %v2264 = vrot.slane %v2262, 4
        %v2265 = vshll.u32 %v2132, 16
        %v2267 = vrot.slane %v2265, 5
        %v2268 = vor.u32 %v2264, %v2267
        %v2269 = vrot.slane %v2268, 4
        %v2271 = vshll.u32 %v2133, 16
        %v2273 = vrot.slane %v2271, 5
        %v2274 = vsel %vm316, %v2269, %v2273
        %v2275 = vshrl.u32 %v2133, 16
        %v2277 = vrot.slane %v2275, 4
        %v2278 = vor.u32 %v2277, %v2273
        %v2279 = vrot.slane %v2278, 4
        %v2281 = vshll.u32 %v2134, 16
        %v2283 = vrot.slane %v2281, 5
        %v2284 = vsel %vm316, %v2279, %v2283
        %v2286 = vshrl.u32 %v2135, 16
        %v2288 = vrot.slane %v2286, 4
        %v2289 = vshll.u32 %v2135, 16
        %v2291 = vrot.slane %v2289, 5
        %v2292 = vor.u32 %v2288, %v2291
        %v2293 = vrot.slane %v2292, 4
        %v2295 = vshll.u32 %v2136, 16
        %v2297 = vrot.slane %v2295, 5
        %v2298 = vsel %vm316, %v2293, %v2297
        %v2299 = vshrl.u32 %v2136, 16
        %v2301 = vrot.slane %v2299, 4
        %v2302 = vor.u32 %v2301, %v2297
        %v2303 = vrot.slane %v2302, 4
        %v2305 = vshll.u32 %v2137, 16
        %v2307 = vrot.slane %v2305, 5
        %v2308 = vsel %vm316, %v2303, %v2307
        %v2310 = vshrl.u32 %v2138, 16
        %v2312 = vrot.slane %v2310, 4
        %v2313 = vshll.u32 %v2138, 16
        %v2315 = vrot.slane %v2313, 5
        %v2316 = vor.u32 %v2312, %v2315
        %v2317 = vrot.slane %v2316, 4
        %v2319 = vshll.u32 %v2139, 16
        %v2321 = vrot.slane %v2319, 5
        %v2322 = vsel %vm316, %v2317, %v2321
        %v2323 = vshrl.u32 %v2139, 16
        %v2325 = vrot.slane %v2323, 4
        %v2326 = vor.u32 %v2325, %v2321
        %v2327 = vrot.slane %v2326, 4
        %v2329 = vshll.u32 %v2140, 16
        %v2331 = vrot.slane %v2329, 5
        %v2332 = vsel %vm316, %v2327, %v2331
        %s2333 = scalar_lea.vmem %s1, 14
        %v2334 = vld [vmem:[%s2333] sm:$0x3]
        %v2335 = vunpack.c.l.b16 %v2154
        %v2336 = vunpack.c.l.b16 %v2164
        %v2337 = vunpack.c.l.b16 %v2178
        %v2338 = vunpack.c.l.b16 %v2188
        %v2339 = vunpack.c.l.b16 %v2202
        %v2340 = vunpack.c.l.b16 %v2212
        %v2341 = vunpack.c.l.b16 %v2226
        %v2342 = vunpack.c.l.b16 %v2236
        %v2343 = vunpack.c.l.b16 %v2250
        %v2344 = vunpack.c.l.b16 %v2260
        %v2345 = vunpack.c.l.b16 %v2274
        %v2346 = vunpack.c.l.b16 %v2284
        %v2347 = vunpack.c.l.b16 %v2298
        %v2348 = vunpack.c.l.b16 %v2308
        %v2349 = vunpack.c.l.b16 %v2322
        %v2350 = vunpack.c.l.b16 %v2332
        %v2351 = vpack.c.b16 %v2336, %v2335
        %v2352 = vpack.c.b16 %v2338, %v2337
        %v2353 = vpack.c.b16 %v2340, %v2339
        %v2354 = vpack.c.b16 %v2342, %v2341
        %v2355 = vpack.c.b16 %v2344, %v2343
        %v2356 = vpack.c.b16 %v2346, %v2345
        %v2357 = vpack.c.b16 %v2348, %v2347
        %v2358 = vpack.c.b16 %v2350, %v2349
        %v2360 = vsel %vm535, %v2351, 0
        %v2363 = vsel %vm535, %v2352, 0
        %v2366 = vsel %vm535, %v2353, 0
        %v2369 = vsel %vm535, %v2354, 0
        %v2372 = vsel %vm535, %v2355, 0
        %v2375 = vsel %vm535, %v2356, 0
        %v2378 = vsel %vm535, %v2357, 0
        %v2381 = vsel %vm535, %v2358, 0
        %v2384 = vand.u32 %v2334, %v563
        %2386 = vmatprep.subr.bf16.mxu0 0
        %2387 = vmatpush1.bf16.msra.mxu0 %v2384
        %2388 = vmatprep.subr.bf16.mxu0 0
        %2389 = vmatpush1.bf16.msra.mxu0 0
        %2390 = vmatprep.subr.bf16.mxu0 0
        %2391 = vmatpush1.bf16.msra.mxu0 0
        %2392 = vmatprep.subr.bf16.mxu0 0
        %2393 = vmatpush1.bf16.msra.mxu0 0
        %2394 = vmatprep.subr.bf16.mxu0 0
        %2395 = vmatpush1.bf16.msra.mxu0 0
        %2396 = vmatprep.subr.bf16.mxu0 0
        %2397 = vmatpush1.bf16.msra.mxu0 0
        %2398 = vmatprep.subr.bf16.mxu0 0
        %2399 = vmatpush1.bf16.msra.mxu0 0
        %2400 = vmatprep.subr.bf16.mxu0 0
        %2401 = vmatpush1.bf16.msra.mxu0 0
        %2402 = vmatprep.subr.bf16.mxu0 0
        %2403 = vmatpush1.bf16.msra.mxu0 0
        %2404 = vmatprep.subr.bf16.mxu0 0
        %2405 = vmatpush1.bf16.msra.mxu0 0
        %2406 = vmatprep.subr.bf16.mxu0 0
        %2407 = vmatpush1.bf16.msra.mxu0 0
        %2408 = vmatprep.subr.bf16.mxu0 0
        %2409 = vmatpush1.bf16.msra.mxu0 0
        %2410 = vmatprep.subr.bf16.mxu0 0
        %2411 = vmatpush1.bf16.msra.mxu0 0
        %2412 = vmatprep.subr.bf16.mxu0 0
        %2413 = vmatpush1.bf16.msra.mxu0 0
        %2414 = vmatprep.subr.bf16.mxu0 0
        %2415 = vmatpush1.bf16.msra.mxu0 0
        %2416 = vmatprep.subr.bf16.mxu0 0
        %2417 = vmatpush1.bf16.msra.mxu0 0
        %2418 = vmatprep.mubr.bf16.mxu0 0
        %2419 = vmatmul.mubr.bf16.gmra.mrb[0].mxu0 %v2360
        %v2420 = vpop.f32.mrb[0].mxu0
        %v2421 = vadd.f32 0.0, %v2420
        %v2422 = vpop.f32.mrb[0].mxu0
        %v2423 = vpop.f32.mrb[0].mxu0
        %v2424 = vadd.f32 0.0, %v2423
        %v2425 = vpop.f32.mrb[0].mxu0
        %2426 = vmatprep.mubr.bf16.mxu0 0
        %2427 = vmatmul.mubr.bf16.gmra.mrb[0].mxu0 %v2363
        %v2428 = vpop.f32.mrb[0].mxu0
        %v2429 = vadd.f32 0.0, %v2428
        %v2430 = vpop.f32.mrb[0].mxu0
        %v2431 = vpop.f32.mrb[0].mxu0
        %v2432 = vadd.f32 0.0, %v2431
        %v2433 = vpop.f32.mrb[0].mxu0
        %2434 = vmatprep.mubr.bf16.mxu0 0
        %2435 = vmatmul.mubr.bf16.gmra.mrb[0].mxu0 %v2366
        %v2436 = vpop.f32.mrb[0].mxu0
        %v2437 = vadd.f32 0.0, %v2436
        %v2438 = vpop.f32.mrb[0].mxu0
        %v2439 = vpop.f32.mrb[0].mxu0
        %v2440 = vadd.f32 0.0, %v2439
        %v2441 = vpop.f32.mrb[0].mxu0
        %2442 = vmatprep.mubr.bf16.mxu0 0
        %2443 = vmatmul.mubr.bf16.gmra.mrb[0].mxu0 %v2369
        %v2444 = vpop.f32.mrb[0].mxu0
        %v2445 = vadd.f32 0.0, %v2444
        %v2446 = vpop.f32.mrb[0].mxu0
        %v2447 = vpop.f32.mrb[0].mxu0
        %v2448 = vadd.f32 0.0, %v2447
        %v2449 = vpop.f32.mrb[0].mxu0
        %2450 = vmatprep.mubr.bf16.mxu0 0
        %2451 = vmatmul.mubr.bf16.gmra.mrb[0].mxu0 %v2372
        %v2452 = vpop.f32.mrb[0].mxu0
        %v2453 = vadd.f32 0.0, %v2452
        %v2454 = vpop.f32.mrb[0].mxu0
        %v2455 = vpop.f32.mrb[0].mxu0
        %v2456 = vadd.f32 0.0, %v2455
        %v2457 = vpop.f32.mrb[0].mxu0
        %2458 = vmatprep.mubr.bf16.mxu0 0
        %2459 = vmatmul.mubr.bf16.gmra.mrb[0].mxu0 %v2375
        %v2460 = vpop.f32.mrb[0].mxu0
        %v2461 = vadd.f32 0.0, %v2460
        %v2462 = vpop.f32.mrb[0].mxu0
        %v2463 = vpop.f32.mrb[0].mxu0
        %v2464 = vadd.f32 0.0, %v2463
        %v2465 = vpop.f32.mrb[0].mxu0
        %2466 = vmatprep.mubr.bf16.mxu0 0
        %2467 = vmatmul.mubr.bf16.gmra.mrb[0].mxu0 %v2378
        %v2468 = vpop.f32.mrb[0].mxu0
        %v2469 = vadd.f32 0.0, %v2468
        %v2470 = vpop.f32.mrb[0].mxu0
        %v2471 = vpop.f32.mrb[0].mxu0
        %v2472 = vadd.f32 0.0, %v2471
        %v2473 = vpop.f32.mrb[0].mxu0
        %2474 = vmatprep.mubr.bf16.mxu0 0
        %2475 = vmatmul.mubr.bf16.gmra.mrb[0].mxu0 %v2381
        %v2476 = vpop.f32.mrb[0].mxu0
        %v2477 = vadd.f32 0.0, %v2476
        %v2478 = vpop.f32.mrb[0].mxu0
        %v2479 = vpop.f32.mrb[0].mxu0
        %v2480 = vadd.f32 0.0, %v2479
        %v2481 = vpop.f32.mrb[0].mxu0
        %2482 = vdwg.mxu0
        %v2483 = vadd.f32 %v2101, %v2421
        %v2484 = vadd.f32 %v2102, %v2424
        %v2485 = vadd.f32 %v2103, %v2429
        %v2486 = vadd.f32 %v2104, %v2432
        %v2487 = vadd.f32 %v2105, %v2437
        %v2488 = vadd.f32 %v2106, %v2440
        %v2489 = vadd.f32 %v2107, %v2445
        %v2490 = vadd.f32 %v2108, %v2448
        %v2491 = vadd.f32 %v2109, %v2453
        %v2492 = vadd.f32 %v2110, %v2456
        %v2493 = vadd.f32 %v2111, %v2461
        %v2494 = vadd.f32 %v2112, %v2464
        %v2495 = vadd.f32 %v2113, %v2469
        %v2496 = vadd.f32 %v2114, %v2472
        %v2497 = vadd.f32 %v2115, %v2477
        %v2498 = vadd.f32 %v2116, %v2480
        %v2499 = vld [vmem:[%s1918] sm:$0xe]
        %v2500 = vld [vmem:[%s1918 + $0xc] sm:$0xe]
        %v2501 = vld [vmem:[%s1918 + $0x18] sm:$0xe]
        %v2502 = vld [vmem:[%s1918 + $0x24] sm:$0xe]
        %v2503 = vld [vmem:[%s1918 + $0x30] sm:$0xe]
        %v2504 = vld [vmem:[%s1918 + $0x3c] sm:$0xe]
        %v2505 = vld [vmem:[%s1918 + $0x48] sm:$0xe]
        %v2506 = vld [vmem:[%s1918 + $0x54] sm:$0xe]
        %v2531 = vrot.slane %v2499, 5
        %v2532 = vrot.slane %v2531, 4
        %v2533 = vrot.slane %v2118, 5
        %v2534 = vsel %vm854, %v2532, %v2533
        %v2535 = vrot.slane %v2533, 4
        %v2536 = vrot.slane %v2119, 5
        %v2537 = vsel %vm854, %v2535, %v2536
        %v2538 = vrot.slane %v2500, 5
        %v2539 = vrot.slane %v2538, 4
        %v2540 = vrot.slane %v2121, 5
        %v2541 = vsel %vm854, %v2539, %v2540
        %v2542 = vrot.slane %v2540, 4
        %v2543 = vrot.slane %v2122, 5
        %v2544 = vsel %vm854, %v2542, %v2543
        %v2545 = vrot.slane %v2501, 5
        %v2546 = vrot.slane %v2545, 4
        %v2547 = vrot.slane %v2124, 5
        %v2548 = vsel %vm854, %v2546, %v2547
        %v2549 = vrot.slane %v2547, 4
        %v2550 = vrot.slane %v2125, 5
        %v2551 = vsel %vm854, %v2549, %v2550
        %v2552 = vrot.slane %v2502, 5
        %v2553 = vrot.slane %v2552, 4
        %v2554 = vrot.slane %v2127, 5
        %v2555 = vsel %vm854, %v2553, %v2554
        %v2556 = vrot.slane %v2554, 4
        %v2557 = vrot.slane %v2128, 5
        %v2558 = vsel %vm854, %v2556, %v2557
        %v2559 = vrot.slane %v2503, 5
        %v2560 = vrot.slane %v2559, 4
        %v2561 = vrot.slane %v2130, 5
        %v2562 = vsel %vm854, %v2560, %v2561
        %v2563 = vrot.slane %v2561, 4
        %v2564 = vrot.slane %v2131, 5
        %v2565 = vsel %vm854, %v2563, %v2564
        %v2566 = vrot.slane %v2504, 5
        %v2567 = vrot.slane %v2566, 4
        %v2568 = vrot.slane %v2133, 5
        %v2569 = vsel %vm854, %v2567, %v2568
        %v2570 = vrot.slane %v2568, 4
        %v2571 = vrot.slane %v2134, 5
        %v2572 = vsel %vm854, %v2570, %v2571
        %v2573 = vrot.slane %v2505, 5
        %v2574 = vrot.slane %v2573, 4
        %v2575 = vrot.slane %v2136, 5
        %v2576 = vsel %vm854, %v2574, %v2575
        %v2577 = vrot.slane %v2575, 4
        %v2578 = vrot.slane %v2137, 5
        %v2579 = vsel %vm854, %v2577, %v2578
        %v2580 = vrot.slane %v2506, 5
        %v2581 = vrot.slane %v2580, 4
        %v2582 = vrot.slane %v2139, 5
        %v2583 = vsel %vm854, %v2581, %v2582
        %v2584 = vrot.slane %v2582, 4
        %v2585 = vrot.slane %v2140, 5
        %v2586 = vsel %vm854, %v2584, %v2585
        %s2587 = scalar_lea.vmem %s1, 16
        %v2588 = vld [vmem:[%s2587] sm:$0x3]
        %v2589 = vunpack.c.l.b16 %v2534
        %v2590 = vunpack.c.l.b16 %v2537
        %v2591 = vunpack.c.l.b16 %v2541
        %v2592 = vunpack.c.l.b16 %v2544
        %v2593 = vunpack.c.l.b16 %v2548
        %v2594 = vunpack.c.l.b16 %v2551
        %v2595 = vunpack.c.l.b16 %v2555
        %v2596 = vunpack.c.l.b16 %v2558
        %v2597 = vunpack.c.l.b16 %v2562
        %v2598 = vunpack.c.l.b16 %v2565
        %v2599 = vunpack.c.l.b16 %v2569
        %v2600 = vunpack.c.l.b16 %v2572
        %v2601 = vunpack.c.l.b16 %v2576
        %v2602 = vunpack.c.l.b16 %v2579
        %v2603 = vunpack.c.l.b16 %v2583
        %v2604 = vunpack.c.l.b16 %v2586
        %v2605 = vpack.c.b16 %v2590, %v2589
        %v2606 = vpack.c.b16 %v2592, %v2591
        %v2607 = vpack.c.b16 %v2594, %v2593
        %v2608 = vpack.c.b16 %v2596, %v2595
        %v2609 = vpack.c.b16 %v2598, %v2597
        %v2610 = vpack.c.b16 %v2600, %v2599
        %v2611 = vpack.c.b16 %v2602, %v2601
        %v2612 = vpack.c.b16 %v2604, %v2603
        %v2614 = vsel %vm535, %v2605, 0
        %v2617 = vsel %vm535, %v2606, 0
        %v2620 = vsel %vm535, %v2607, 0
        %v2623 = vsel %vm535, %v2608, 0
        %v2626 = vsel %vm535, %v2609, 0
        %v2629 = vsel %vm535, %v2610, 0
        %v2632 = vsel %vm535, %v2611, 0
        %v2635 = vsel %vm535, %v2612, 0
        %v2638 = vand.u32 %v2588, %v563
        %2640 = vmatprep.subr.bf16.mxu0 0
        %2641 = vmatpush1.bf16.msra.mxu0 %v2638
        %2642 = vmatprep.subr.bf16.mxu0 0
        %2643 = vmatpush1.bf16.msra.mxu0 0
        %2644 = vmatprep.subr.bf16.mxu0 0
        %2645 = vmatpush1.bf16.msra.mxu0 0
        %2646 = vmatprep.subr.bf16.mxu0 0
        %2647 = vmatpush1.bf16.msra.mxu0 0
        %2648 = vmatprep.subr.bf16.mxu0 0
        %2649 = vmatpush1.bf16.msra.mxu0 0
        %2650 = vmatprep.subr.bf16.mxu0 0
        %2651 = vmatpush1.bf16.msra.mxu0 0
        %2652 = vmatprep.subr.bf16.mxu0 0
        %2653 = vmatpush1.bf16.msra.mxu0 0
        %2654 = vmatprep.subr.bf16.mxu0 0
        %2655 = vmatpush1.bf16.msra.mxu0 0
        %2656 = vmatprep.subr.bf16.mxu0 0
        %2657 = vmatpush1.bf16.msra.mxu0 0
        %2658 = vmatprep.subr.bf16.mxu0 0
        %2659 = vmatpush1.bf16.msra.mxu0 0
        %2660 = vmatprep.subr.bf16.mxu0 0
        %2661 = vmatpush1.bf16.msra.mxu0 0
        %2662 = vmatprep.subr.bf16.mxu0 0
        %2663 = vmatpush1.bf16.msra.mxu0 0
        %2664 = vmatprep.subr.bf16.mxu0 0
        %2665 = vmatpush1.bf16.msra.mxu0 0
        %2666 = vmatprep.subr.bf16.mxu0 0
        %2667 = vmatpush1.bf16.msra.mxu0 0
        %2668 = vmatprep.subr.bf16.mxu0 0
        %2669 = vmatpush1.bf16.msra.mxu0 0
        %2670 = vmatprep.subr.bf16.mxu0 0
        %2671 = vmatpush1.bf16.msra.mxu0 0
        %2672 = vmatprep.mubr.bf16.mxu0 0
        %2673 = vmatmul.mubr.bf16.gmra.mrb[0].mxu0 %v2614
        %v2674 = vpop.f32.mrb[0].mxu0
        %v2675 = vadd.f32 0.0, %v2674
        %v2676 = vpop.f32.mrb[0].mxu0
        %v2677 = vpop.f32.mrb[0].mxu0
        %v2678 = vadd.f32 0.0, %v2677
        %v2679 = vpop.f32.mrb[0].mxu0
        %2680 = vmatprep.mubr.bf16.mxu0 0
        %2681 = vmatmul.mubr.bf16.gmra.mrb[0].mxu0 %v2617
        %v2682 = vpop.f32.mrb[0].mxu0
        %v2683 = vadd.f32 0.0, %v2682
        %v2684 = vpop.f32.mrb[0].mxu0
        %v2685 = vpop.f32.mrb[0].mxu0
        %v2686 = vadd.f32 0.0, %v2685
        %v2687 = vpop.f32.mrb[0].mxu0
        %2688 = vmatprep.mubr.bf16.mxu0 0
        %2689 = vmatmul.mubr.bf16.gmra.mrb[0].mxu0 %v2620
        %v2690 = vpop.f32.mrb[0].mxu0
        %v2691 = vadd.f32 0.0, %v2690
        %v2692 = vpop.f32.mrb[0].mxu0
        %v2693 = vpop.f32.mrb[0].mxu0
        %v2694 = vadd.f32 0.0, %v2693
        %v2695 = vpop.f32.mrb[0].mxu0
        %2696 = vmatprep.mubr.bf16.mxu0 0
        %2697 = vmatmul.mubr.bf16.gmra.mrb[0].mxu0 %v2623
        %v2698 = vpop.f32.mrb[0].mxu0
        %v2699 = vadd.f32 0.0, %v2698
        %v2700 = vpop.f32.mrb[0].mxu0
        %v2701 = vpop.f32.mrb[0].mxu0
        %v2702 = vadd.f32 0.0, %v2701
        %v2703 = vpop.f32.mrb[0].mxu0
        %2704 = vmatprep.mubr.bf16.mxu0 0
        %2705 = vmatmul.mubr.bf16.gmra.mrb[0].mxu0 %v2626
        %v2706 = vpop.f32.mrb[0].mxu0
        %v2707 = vadd.f32 0.0, %v2706
        %v2708 = vpop.f32.mrb[0].mxu0
        %v2709 = vpop.f32.mrb[0].mxu0
        %v2710 = vadd.f32 0.0, %v2709
        %v2711 = vpop.f32.mrb[0].mxu0
        %2712 = vmatprep.mubr.bf16.mxu0 0
        %2713 = vmatmul.mubr.bf16.gmra.mrb[0].mxu0 %v2629
        %v2714 = vpop.f32.mrb[0].mxu0
        %v2715 = vadd.f32 0.0, %v2714
        %v2716 = vpop.f32.mrb[0].mxu0
        %v2717 = vpop.f32.mrb[0].mxu0
        %v2718 = vadd.f32 0.0, %v2717
        %v2719 = vpop.f32.mrb[0].mxu0
        %2720 = vmatprep.mubr.bf16.mxu0 0
        %2721 = vmatmul.mubr.bf16.gmra.mrb[0].mxu0 %v2632
        %v2722 = vpop.f32.mrb[0].mxu0
        %v2723 = vadd.f32 0.0, %v2722
        %v2724 = vpop.f32.mrb[0].mxu0
        %v2725 = vpop.f32.mrb[0].mxu0
        %v2726 = vadd.f32 0.0, %v2725
        %v2727 = vpop.f32.mrb[0].mxu0
        %2728 = vmatprep.mubr.bf16.mxu0 0
        %2729 = vmatmul.mubr.bf16.gmra.mrb[0].mxu0 %v2635
        %v2730 = vpop.f32.mrb[0].mxu0
        %v2731 = vadd.f32 0.0, %v2730
        %v2732 = vpop.f32.mrb[0].mxu0
        %v2733 = vpop.f32.mrb[0].mxu0
        %v2734 = vadd.f32 0.0, %v2733
        %v2735 = vpop.f32.mrb[0].mxu0
        %2736 = vdwg.mxu0
        %v2737 = vadd.f32 %v2483, %v2675
        %v2738 = vadd.f32 %v2484, %v2678
        %v2739 = vadd.f32 %v2485, %v2683
        %v2740 = vadd.f32 %v2486, %v2686
        %v2741 = vadd.f32 %v2487, %v2691
        %v2742 = vadd.f32 %v2488, %v2694
        %v2743 = vadd.f32 %v2489, %v2699
        %v2744 = vadd.f32 %v2490, %v2702
        %v2745 = vadd.f32 %v2491, %v2707
        %v2746 = vadd.f32 %v2492, %v2710
        %v2747 = vadd.f32 %v2493, %v2715
        %v2748 = vadd.f32 %v2494, %v2718
        %v2749 = vadd.f32 %v2495, %v2723
        %v2750 = vadd.f32 %v2496, %v2726
        %v2751 = vadd.f32 %v2497, %v2731
        %v2752 = vadd.f32 %v2498, %v2734
        %v2753 = vld [vmem:[%s2] sm:$0x1]
        %v2755 = vlaneseq
        %v2756 = vshrl.u32 %v2755, 7
        %v2757 = vsub.s32 0, %v2756
        %v2758 = vrot.slane %v2753, %v2757
        %v2760 = vadd.f32 %v2737, %v2758
        %v2761 = vadd.f32 %v2738, %v2758
        %v2762 = vadd.f32 %v2739, %v2758
        %v2763 = vadd.f32 %v2740, %v2758
        %v2764 = vadd.f32 %v2741, %v2758
        %v2765 = vadd.f32 %v2742, %v2758
        %v2766 = vadd.f32 %v2743, %v2758
        %v2767 = vadd.f32 %v2744, %v2758
        %v2768 = vadd.f32 %v2745, %v2758
        %v2769 = vadd.f32 %v2746, %v2758
        %v2770 = vadd.f32 %v2747, %v2758
        %v2771 = vadd.f32 %v2748, %v2758
        %v2772 = vadd.f32 %v2749, %v2758
        %v2773 = vadd.f32 %v2750, %v2758
        %v2774 = vadd.f32 %v2751, %v2758
        %v2775 = vadd.f32 %v2752, %v2758
        %v2776 = vmax.f32 %v2760, 0.0
        %v2777 = vmax.f32 %v2761, 0.0
        %v2778 = vmax.f32 %v2762, 0.0
        %v2779 = vmax.f32 %v2763, 0.0
        %v2780 = vmax.f32 %v2764, 0.0
        %v2781 = vmax.f32 %v2765, 0.0
        %v2782 = vmax.f32 %v2766, 0.0
        %v2783 = vmax.f32 %v2767, 0.0
        %v2784 = vmax.f32 %v2768, 0.0
        %v2785 = vmax.f32 %v2769, 0.0
        %v2786 = vmax.f32 %v2770, 0.0
        %v2787 = vmax.f32 %v2771, 0.0
        %v2788 = vmax.f32 %v2772, 0.0
        %v2789 = vmax.f32 %v2773, 0.0
        %v2790 = vmax.f32 %v2774, 0.0
        %v2791 = vmax.f32 %v2775, 0.0
        %v2792 = vld [vmem:[#allocation2] sm:$0x1]
        %v2793 = vadd.f32 %v2776, %v2777
        %v2794 = vadd.f32 %v2793, %v2778
        %v2795 = vadd.f32 %v2794, %v2779
        %v2796 = vadd.f32 %v2795, %v2780
        %v2797 = vadd.f32 %v2796, %v2781
        %v2798 = vadd.f32 %v2797, %v2782
        %v2799 = vadd.f32 %v2798, %v2783
        %v2800 = vadd.f32 %v2799, %v2784
        %v2801 = vadd.f32 %v2800, %v2785
        %v2802 = vadd.f32 %v2801, %v2786
        %v2803 = vadd.f32 %v2802, %v2787
        %v2804 = vadd.f32 %v2803, %v2788
        %v2805 = vadd.f32 %v2804, %v2789
        %v2806 = vadd.f32 %v2805, %v2790
        %v2807 = vadd.f32 %v2806, %v2791
        %v2808 = vrot.slane %v2807, 4
        %v2809 = vadd.f32 %v2807, %v2808
        %v2810 = vrot.slane %v2809, 2
        %v2811 = vadd.f32 %v2809, %v2810
        %v2812 = vrot.slane %v2811, 1
        %v2813 = vadd.f32 %v2811, %v2812
        %v2814 = vadd.f32 %v2792, %v2813
        %2815 = vst [vmem:[#allocation2] sm:$0x1] %v2814
        %p2816 = scmp.eq.s32.totalorder %s25, 1
        // Predicated region
        $region49: #{tpu_custom_call.1} parent=43 // pred_check
          %p2817 = pneg %p2816
        $region50: #{tpu_custom_call.1} parent=43 // pred_check_branch
          %2819 = sbr.rel (%p2817) target = $region52
        $region51: #{tpu_custom_call.1} parent=43 // pred_region
          %v2820 = vld [vmem:[#allocation2] sm:$0x1]
          %v2821 = vmul.f32 %v2820, 0.00390625
          %v2822 = vpack.c.bf16 %v2821, %v2821
          %v2823 = vld [vmem:[%s3] sm:$0xff]
          %v2824 = vld [vmem:[%s3 + $0x8] sm:$0xff]
          %v2825 = vld [vmem:[%s3 + $0x10] sm:$0xff]
          %v2826 = vld [vmem:[%s3 + $0x18] sm:$0xff]
          %v2827 = vld [vmem:[%s3 + $0x20] sm:$0xff]
          %v2828 = vld [vmem:[%s3 + $0x28] sm:$0xff]
          %v2829 = vld [vmem:[%s3 + $0x30] sm:$0xff]
          %v2830 = vld [vmem:[%s3 + $0x38] sm:$0xff]
          %v2831 = vld [vmem:[%s3 + $0x40] sm:$0xff]
          %v2832 = vld [vmem:[%s3 + $0x48] sm:$0xff]
          %v2833 = vld [vmem:[%s3 + $0x50] sm:$0xff]
          %v2834 = vld [vmem:[%s3 + $0x58] sm:$0xff]
          %v2835 = vld [vmem:[%s3 + $0x60] sm:$0xff]
          %v2836 = vld [vmem:[%s3 + $0x68] sm:$0xff]
          %v2837 = vld [vmem:[%s3 + $0x70] sm:$0xff]
          %v2838 = vld [vmem:[%s3 + $0x78] sm:$0xff]
          %v2839 = vld [vmem:[%s4] sm:$0x3]
          %v2856 = vunpack.c.l.b16 %v2823
          %v2857 = vunpack.c.h.b16 %v2823
          %v2858 = vunpack.c.l.b16 %v2824
          %v2859 = vunpack.c.h.b16 %v2824
          %v2860 = vunpack.c.l.b16 %v2825
          %v2861 = vunpack.c.h.b16 %v2825
          %v2862 = vunpack.c.l.b16 %v2826
          %v2863 = vunpack.c.h.b16 %v2826
          %v2864 = vunpack.c.l.b16 %v2827
          %v2865 = vunpack.c.h.b16 %v2827
          %v2866 = vunpack.c.l.b16 %v2828
          %v2867 = vunpack.c.h.b16 %v2828
          %v2868 = vunpack.c.l.b16 %v2829
          %v2869 = vunpack.c.h.b16 %v2829
          %v2870 = vunpack.c.l.b16 %v2830
          %v2871 = vunpack.c.h.b16 %v2830
          %v2872 = vunpack.c.l.b16 %v2831
          %v2873 = vunpack.c.h.b16 %v2831
          %v2874 = vunpack.c.l.b16 %v2832
          %v2875 = vunpack.c.h.b16 %v2832
          %v2876 = vunpack.c.l.b16 %v2833
          %v2877 = vunpack.c.h.b16 %v2833
          %v2878 = vunpack.c.l.b16 %v2834
          %v2879 = vunpack.c.h.b16 %v2834
          %v2880 = vunpack.c.l.b16 %v2835
          %v2881 = vunpack.c.h.b16 %v2835
          %v2882 = vunpack.c.l.b16 %v2836
          %v2883 = vunpack.c.h.b16 %v2836
          %v2884 = vunpack.c.l.b16 %v2837
          %v2885 = vunpack.c.h.b16 %v2837
          %v2886 = vunpack.c.l.b16 %v2838
          %v2887 = vunpack.c.h.b16 %v2838
          %v2888 = vpack.c.b16 %v2858, %v2856
          %v2889 = vpack.c.b16 %v2859, %v2857
          %v2890 = vpack.c.b16 %v2862, %v2860
          %v2891 = vpack.c.b16 %v2863, %v2861
          %v2892 = vpack.c.b16 %v2866, %v2864
          %v2893 = vpack.c.b16 %v2867, %v2865
          %v2894 = vpack.c.b16 %v2870, %v2868
          %v2895 = vpack.c.b16 %v2871, %v2869
          %v2896 = vpack.c.b16 %v2874, %v2872
          %v2897 = vpack.c.b16 %v2875, %v2873
          %v2898 = vpack.c.b16 %v2878, %v2876
          %v2899 = vpack.c.b16 %v2879, %v2877
          %v2900 = vpack.c.b16 %v2882, %v2880
          %v2901 = vpack.c.b16 %v2883, %v2881
          %v2902 = vpack.c.b16 %v2886, %v2884
          %v2903 = vpack.c.b16 %v2887, %v2885
          %v2921 = vlaneseq
          %v2922 = vshrl.u32 %v2921, 7
          %v2923 = vsub.s32 0, %v2922
          %v2924 = vrot.slane %v2839, %v2923
          %v2925 = vlaneseq
          %v2926 = vshrl.u32 %v2925, 7
          %v2927 = vsub.s32 1, %v2926
          %v2928 = vrot.slane %v2839, %v2927
          %2931 = vmatprep.subr.bf16.mxu0 %v2889
          %2932 = vmatpush1.bf16.msra.mxu0 %v2888
          %2933 = vmatprep.subr.bf16.mxu0 %v2891
          %2934 = vmatpush1.bf16.msra.mxu0 %v2890
          %2935 = vmatprep.subr.bf16.mxu0 %v2893
          %2936 = vmatpush1.bf16.msra.mxu0 %v2892
          %2937 = vmatprep.subr.bf16.mxu0 %v2895
          %2938 = vmatpush1.bf16.msra.mxu0 %v2894
          %2939 = vmatprep.subr.bf16.mxu0 %v2897
          %2940 = vmatpush1.bf16.msra.mxu0 %v2896
          %2941 = vmatprep.subr.bf16.mxu0 %v2899
          %2942 = vmatpush1.bf16.msra.mxu0 %v2898
          %2943 = vmatprep.subr.bf16.mxu0 %v2901
          %2944 = vmatpush1.bf16.msra.mxu0 %v2900
          %2945 = vmatprep.subr.bf16.mxu0 %v2903
          %2946 = vmatpush1.bf16.msra.mxu0 %v2902
          %2947 = vmatprep.subr.bf16.mxu0 0
          %2948 = vmatpush1.bf16.msra.mxu0 0
          %2949 = vmatprep.subr.bf16.mxu0 0
          %2950 = vmatpush1.bf16.msra.mxu0 0
          %2951 = vmatprep.subr.bf16.mxu0 0
          %2952 = vmatpush1.bf16.msra.mxu0 0
          %2953 = vmatprep.subr.bf16.mxu0 0
          %2954 = vmatpush1.bf16.msra.mxu0 0
          %2955 = vmatprep.subr.bf16.mxu0 0
          %2956 = vmatpush1.bf16.msra.mxu0 0
          %2957 = vmatprep.subr.bf16.mxu0 0
          %2958 = vmatpush1.bf16.msra.mxu0 0
          %2959 = vmatprep.subr.bf16.mxu0 0
          %2960 = vmatpush1.bf16.msra.mxu0 0
          %2961 = vmatprep.subr.bf16.mxu0 0
          %2962 = vmatpush1.bf16.msra.mxu0 0
          %2963 = vmatprep.mubr.bf16.mxu0 0
          %2964 = vmatmul.mubr.bf16.gmra.mrb[0].mxu0 %v2822
          %v2965 = vpop.f32.mrb[0].mxu0
          %v2966 = vadd.f32 %v2924, %v2965
          %v2967 = vpop.f32.mrb[0].mxu0
          %v2968 = vadd.f32 %v2928, %v2967
          %v2969 = vpop.f32.mrb[0].mxu0
          %v2970 = vpop.f32.mrb[0].mxu0
          %2971 = vdwg.mxu0
          %v2972 = vmax.f32 %v2966, 0.0
          %v2973 = vmax.f32 %v2968, 0.0
          %v2974 = vld [vmem:[%s278] sm:$0x3]
          %vm2975 = vcmp.lt.f32.partialorder %v2974, 0.5
          %v2976 = vmul.f32 %v2972, 2.0
          %v2977 = vmul.f32 %v2973, 2.0
          %v2980 = vcombine.low %v2976, %v2977
          %v2982 = vunpack.c.l.s4 1966171168
          %v2983 = vunpack.c.0.s8 %v2982
          %v2984 = vlaneseq
          %v2985 = vshrl.u32 %v2984, 7
          %v2986 = vsub.s32 %v2983, %v2985
          %v2987 = vrot.slane %v2980, %v2986
          %v2989 = vunpack.c.l.s4 1966171168
          %v2990 = vunpack.c.0.s8 %v2989
          %v2991 = vlaneseq
          %v2992 = vshrl.u32 %v2991, 7
          %v2993 = vsub.s32 %v2990, %v2992
          %v2994 = vrot.slane %v2987, %v2993
          %v2996 = vsel %vm2975, %v2994, 0.0
          %v2997 = vlaneseq
          %vm2998 = vcmp.ge.s32.totalorder %v2997, 0
          %vm2999 = vcmp.lt.s32.totalorder %v2997, 256
          %vm3000 = vmand %vm2998, %vm2999
          %3001 = vst.msk [vmem:[%s269] sm:$0x3] %vm3000, %v2996
        $region52: #{tpu_custom_call.1} parent=43 // pred_fallthru
          _
        %s3002 = sand.u32 %s176, 1
        %s3003 = scalar_lea.sflag [#allocation4], %s3002
        %s3004 = sand.u32 %s176, 1
        %s3005 = smul.addr %s3004, 2
        %s3006 = scalar_lea.vmem [#allocation3], %s3005
        // Predicated region
        $region53: #{tpu_custom_call.1} parent=43 // pred_check
          %p3007 = pneg %p186
        $region54: #{tpu_custom_call.1} parent=43 // pred_check_branch
          %3009 = sbr.rel (%p3007) target = $region56
        $region55: #{tpu_custom_call.1} parent=43 // pred_region
          %s3011 = ssub.s32 32, 32
          %3012 = vsyncadd %s3003, %s3011
          %s3013 = smul.addr %s24, 2
          %s3014 = smul.addr %s3013, 16
          %s3015 = scalar_lea.hbm %s6, %s3014
          %s3017 = sshll.u32 %s3006, 4
          %s3018 = int_to_ptr.vmem [resolvable:$true] %s3017
          %3020 = dma.vmem_to_hbm [thread:$0]  %s3018, 32, %s3015, %s3003
        $region56: #{tpu_custom_call.1} parent=43 // pred_fallthru
          _
      $region44: #{tpu_custom_call.1} parent=5 // pred_fallthru
        _
      %p3021 = scmp.le.s32.totalorder 2, %s15
      // Predicated region
      $region57: #{tpu_custom_call.1} parent=5 // pred_check
        %p3022 = pneg %p3021
      $region58: #{tpu_custom_call.1} parent=5 // pred_check_branch
        %3024 = sbr.rel (%p3022) target = $region60
      $region59: #{tpu_custom_call.1} parent=5 // pred_region
        %s3025 = ssub.s32 %s15, 2
        // Predicated region
        $region61: #{tpu_custom_call.1} parent=59 // pred_check
          %p3026 = pneg %p192
        $region62: #{tpu_custom_call.1} parent=59 // pred_check_branch
          %3028 = sbr.rel (%p3026) target = $region64
        $region63: #{tpu_custom_call.1} parent=59 // pred_region
          %s3029 = sand.u32 %s177, 1
          %s3030 = scalar_lea.sflag [#allocation4], %s3029
          %s3031 = sand.u32 %s177, 1
          %s3032 = smul.addr %s3031, 2
          %s3033 = scalar_lea.vmem [#allocation3], %s3032
          %3034 = dma.done %s3030, 32
        $region64: #{tpu_custom_call.1} parent=59 // pred_fallthru
          _
      $region60: #{tpu_custom_call.1} parent=5 // pred_fallthru
        _
    $region6: #{tpu_custom_call.1} parent=1 // loop_footer
      %s19 = sadd.s32 1, %s15
    $region7: #{tpu_custom_call.1} parent=1 // loop_footer_branch
      %14 = sbr.rel target = $region3
    $region8: #{tpu_custom_call.1} parent=1 // loop_exit
      _
    %3035 = vsyncpa [#allocation4], 1
    %s3036 = scalar_lea.sflag [#allocation4], 1
    %3037 = vsyncpa %s3036, 1

</llo_original>
